<compile_context>
chip_gen: v5e
topology: v5e:2x2
jax: 0.10.0
libtpu: 0.0.40
codegen_flags: <defaults>
</compile_context>

<pallas_src>
import jax
import jax.numpy as jnp
import numpy as np
from jax.experimental import pallas as pl
from jax.experimental.pallas import tpu as pltpu

# ----------------------------- model config ---------------------------------
VOCAB = 50            # input_size (embedding vocabulary)
VOCAB_PAD = 128       # vocab rows padded to one lane width for the one-hot matmul
EMBED = 32            # embed_size
HIDDEN = 32           # hidden_size
NUM_LAYERS = 2
BIDIRECTIONAL = True  # this implementation covers the bidirectional configuration
SEQ = 8
BATCH = 2
FC1_OUT = 128
FC2_OUT = 5
OUT_PAD = 128         # fc_out1 output padded to a full lane width (sliced on host)

H2 = 2 * HIDDEN       # 64  : combined [fwd | bwd] hidden width
GW = 8 * HIDDEN       # 256 : combined gate width (4 gates x 2 directions), gate-interleaved

# Row offsets inside the 256-wide LSTM weight blob (all 8-aligned).
A_L0_WIH, A_L0_WHH, A_L0_B = 0, 32, 96
A_L1_WIH, A_L1_WHH, A_L1_B = 104, 168, 232
A_ROWS = 240
# Row offsets inside the 128-wide FC weight blob.
B_FC1_W, B_FC1_B, B_FC2_W, B_FC2_B = 0, 64, 72, 200
B_ROWS = 208


# ----------------------------- Pallas kernel --------------------------------
def _bdot(a, b):
    """Single-pass bf16 MXU matmul with f32 accumulation."""
    return jnp.dot(a.astype(jnp.bfloat16), b.astype(jnp.bfloat16),
                   preferred_element_type=jnp.float32)


def fused_forward_kernel(tok_ref, emb_ref, wA_ref, wB_ref, out_ref, y_ref):
    # ---- embedding lookup as a one-hot MXU matmul (off the serial chain) ----
    tok = tok_ref[...]                                                   # (T*B, 1) int32
    lanes = jax.lax.broadcasted_iota(jnp.int32, (SEQ * BATCH, VOCAB_PAD), 1)
    onehot = (tok == lanes).astype(jnp.float32)                          # exact 0/1
    x0 = _bdot(onehot, emb_ref[...])                                     # (T*B, EMBED)

    # Loop-invariant lane masks for the interleaved gate layout
    #   [i_f i_b | f_f f_b | g_f g_b | o_f o_b], 32 lanes each.
    lane = jax.lax.broadcasted_iota(jnp.int32, (BATCH, GW), 1)
    fwd_mask = (lane % H2) < HIDDEN                       # fwd sub-block of every gate
    g_mask = (lane >= 4 * HIDDEN) & (lane < 6 * HIDDEN)   # g gate (both dirs) -> tanh
    half_mask = jax.lax.broadcasted_iota(jnp.int32, (BATCH, H2), 1) < HIDDEN

    def bidir_layer(x_in, wih, whh, b, y_out):
        """x_in: (T*B, Din).  Returns outputs[-1] = (B, 2H) = [h_fwd(T-1) | h_bwd(T-1)].
        If y_out is not None, also stores the full per-timestep [h_fwd | h_bwd] output."""
        wih_bf = wih.astype(jnp.bfloat16)                 # cast weights once, not per step
        whh_bf = whh.astype(jnp.bfloat16)

        # Hoisted input projection (+ bias) for all timesteps and both directions.
        xp = jnp.dot(x_in.astype(jnp.bfloat16), wih_bf,
                     preferred_element_type=jnp.float32) + b             # (T*B, GW) f32

        h = jnp.zeros((BATCH, H2), jnp.float32)
        c = jnp.zeros((BATCH, H2), jnp.float32)
        h_first = None

        # Fully unrolled; fwd (time t) and bwd (time T-1-t) fused into one matmul / one cell.
        for t in range(SEQ):
            tr = SEQ - 1 - t
            # Gate inputs: fwd columns from time t, bwd columns from time T-1-t (h-independent,
            # so this select sits off the serial h->h chain).
            gx_t = jnp.where(fwd_mask,
                             xp[t * BATCH:(t + 1) * BATCH, :],
                             xp[tr * BATCH:(tr + 1) * BATCH, :])
            # TODO(synk): hold whh resident on the MXU across the 8 steps via
            # pltpu.matmul_push_rhs / matmul_acc_lhs / matmul_pop (review opt #4).
            gates = gx_t + jnp.dot(h.astype(jnp.bfloat16), whh_bf,
                                   preferred_element_type=jnp.float32)   # (B, GW)
            sig = jax.nn.sigmoid(gates)
            th = jnp.tanh(gates)
            act = jnp.where(g_mask, th, sig)              # i, f, o -> sigmoid ; g -> tanh
            i = act[:, 0 * H2:1 * H2]
            f = act[:, 1 * H2:2 * H2]
            g = act[:, 2 * H2:3 * H2]
            o = act[:, 3 * H2:4 * H2]
            c = f * c + i * g
            h = o * jnp.tanh(c)
            if y_out is not None:
                y_out[t * BATCH:(t + 1) * BATCH, 0:HIDDEN] = h[:, 0:HIDDEN]
                y_out[tr * BATCH:(tr + 1) * BATCH, HIDDEN:H2] = h[:, HIDDEN:H2]
            if t == 0:
                h_first = h
        # outputs[-1]: fwd state after the full pass, bwd state after its first step.
        return jnp.where(half_mask, h, h_first)

    # ---- layer 0 (writes the full per-timestep output for layer 1) ----------
    bidir_layer(x0,
                wA_ref[A_L0_WIH:A_L0_WIH + EMBED, :],
                wA_ref[A_L0_WHH:A_L0_WHH + H2, :],
                wA_ref[A_L0_B:A_L0_B + 1, :],
                y_ref)

    # ---- layer 1 (only outputs[-1] is needed downstream; no stores) ---------
    h_last = bidir_layer(y_ref[...],
                         wA_ref[A_L1_WIH:A_L1_WIH + H2, :],
                         wA_ref[A_L1_WHH:A_L1_WHH + H2, :],
                         wA_ref[A_L1_B:A_L1_B + 1, :],
                         None)

    # ---- fc_out -> fc_out1 ---------------------------------------------------
    h1 = _bdot(h_last, wB_ref[B_FC1_W:B_FC1_W + H2, :]) + wB_ref[B_FC1_B:B_FC1_B + 1, :]
    out_ref[...] = (_bdot(h1, wB_ref[B_FC2_W:B_FC2_W + FC1_OUT, :])
                    + wB_ref[B_FC2_B:B_FC2_B + 1, :])


# ----------------------------- wrapper ---------------------------------------
def lstm_forward(kparams, x_tokens):
    """x_tokens: (SEQ, BATCH) int32 -> (BATCH, FC2_OUT) float32."""
    tok = x_tokens.reshape(SEQ * BATCH, 1).astype(jnp.int32)
    vmem = pl.BlockSpec(memory_space=pltpu.MemorySpace.VMEM)
    out_padded = pl.pallas_call(
        fused_forward_kernel,
        out_shape=jax.ShapeDtypeStruct((BATCH, OUT_PAD), jnp.float32),   # lane-dense; sliced below
        in_specs=[vmem, vmem, vmem, vmem],
        out_specs=vmem,
        scratch_shapes=[pltpu.VMEM((SEQ * BATCH, H2), jnp.float32)],     # layer-0 output
    )(tok, kparams["emb"], kparams["wA"], kparams["wB"])
    return out_padded[:, :FC2_OUT]


# ----------------------------- params ----------------------------------------
def init_params(key):
    """Logical parameters (same shapes/semantics as the PyTorch module, weights pre-transposed)."""
    num_dirs = 2 if BIDIRECTIONAL else 1
    keys = jax.random.split(key, 64)
    kit = iter(keys)

    def u(k, shape, scale=0.1):
        return jax.random.uniform(k, shape, jnp.float32, -scale, scale)

    params = {"embedding": jax.random.normal(next(kit), (VOCAB, EMBED), jnp.float32)}

    lstm = []
    for layer in range(NUM_LAYERS):
        in_size = EMBED if layer == 0 else HIDDEN * num_dirs
        dirs = []
        for _ in range(num_dirs):
            dirs.append({
                "w_ih": u(next(kit), (in_size, 4 * HIDDEN)),   # pre-transposed (in, 4H)
                "w_hh": u(next(kit), (HIDDEN, 4 * HIDDEN)),
                "b": u(next(kit), (1, 4 * HIDDEN)),            # b_ih + b_hh folded
            })
        lstm.append(dirs)
    params["lstm"] = lstm

    fc_in = HIDDEN * num_dirs
    params["fc_out_w"] = u(next(kit), (fc_in, FC1_OUT))
    params["fc_out_b"] = u(next(kit), (1, FC1_OUT))
    params["fc_out1_w"] = u(next(kit), (FC1_OUT, FC2_OUT))
    params["fc_out1_b"] = u(next(kit), (1, FC2_OUT))
    return params


def pack_params(params):
    """One-time host-side packing: dense gate interleave + two contiguous weight blobs."""
    H = HIDDEN

    def interleave_gates(w_f, w_b):
        # (rows, 4H) x 2 -> (rows, 8H): [i_f i_b | f_f f_b | g_f g_b | o_f o_b]
        rows = w_f.shape[0]
        out = jnp.zeros((rows, GW), jnp.float32)
        for k in range(4):
            out = out.at[:, (2 * k) * H:(2 * k + 1) * H].set(w_f[:, k * H:(k + 1) * H])
            out = out.at[:, (2 * k + 1) * H:(2 * k + 2) * H].set(w_b[:, k * H:(k + 1) * H])
        return out

    lstm = params["lstm"]
    z = jnp.zeros((H, 4 * H), jnp.float32)

    def layer_blocks(layer):
        f, b = lstm[layer][0], lstm[layer][1]
        wih = interleave_gates(f["w_ih"], b["w_ih"])                         # (Din, 256)
        whh = jnp.concatenate([interleave_gates(f["w_hh"], z),               # block-diagonal
                               interleave_gates(z, b["w_hh"])], axis=0)      # (64, 256)
        bias = interleave_gates(f["b"], b["b"])                              # (1, 256)
        return wih, whh, bias

    wih0, whh0, b0 = layer_blocks(0)
    wih1, whh1, b1 = layer_blocks(1)

    wA = jnp.zeros((A_ROWS, GW), jnp.float32)
    wA = wA.at[A_L0_WIH:A_L0_WIH + EMBED].set(wih0)
    wA = wA.at[A_L0_WHH:A_L0_WHH + H2].set(whh0)
    wA = wA.at[A_L0_B:A_L0_B + 1].set(b0)
    wA = wA.at[A_L1_WIH:A_L1_WIH + H2].set(wih1)
    wA = wA.at[A_L1_WHH:A_L1_WHH + H2].set(whh1)
    wA = wA.at[A_L1_B:A_L1_B + 1].set(b1)

    wB = jnp.zeros((B_ROWS, FC1_OUT), jnp.float32)
    wB = wB.at[B_FC1_W:B_FC1_W + H2].set(params["fc_out_w"])                  # (64, 128)
    wB = wB.at[B_FC1_B:B_FC1_B + 1].set(params["fc_out_b"])                   # (1, 128)
    wB = wB.at[B_FC2_W:B_FC2_W + FC1_OUT, 0:FC2_OUT].set(params["fc_out1_w"])  # (128, 5)
    wB = wB.at[B_FC2_B:B_FC2_B + 1, 0:FC2_OUT].set(params["fc_out1_b"])

    emb = jnp.zeros((VOCAB_PAD, EMBED), jnp.float32).at[:VOCAB, :].set(params["embedding"])
    return {"emb": emb, "wA": wA, "wB": wB}


# ----------------------------- pure-JAX reference ----------------------------
def _make_dot(matmul_dtype):
    if matmul_dtype is None:
        return lambda a, b: jnp.dot(a, b, precision=jax.lax.Precision.HIGHEST)
    return lambda a, b: jnp.dot(a.astype(matmul_dtype), b.astype(matmul_dtype),
                                preferred_element_type=jnp.float32)


def _ref_layer(x_seq, w_ih, w_hh, b, dot):
    hidden = w_hh.shape[0]

    def step(carry, x_t):
        h, c = carry
        gates = dot(x_t, w_ih) + dot(h, w_hh) + b
        i = jax.nn.sigmoid(gates[:, 0 * hidden:1 * hidden])
        f = jax.nn.sigmoid(gates[:, 1 * hidden:2 * hidden])
        g = jnp.tanh(gates[:, 2 * hidden:3 * hidden])
        o = jax.nn.sigmoid(gates[:, 3 * hidden:4 * hidden])
        c = f * c + i * g
        h = o * jnp.tanh(c)
        return (h, c), h

    batch = x_seq.shape[1]
    init = (jnp.zeros((batch, hidden), jnp.float32),
            jnp.zeros((batch, hidden), jnp.float32))
    _, hs = jax.lax.scan(step, init, x_seq)
    return hs


def ref_forward(params, x_tokens, matmul_dtype=None):
    dot = _make_dot(matmul_dtype)
    inp = jnp.take(params["embedding"], x_tokens, axis=0)
    for layer_dirs in params["lstm"]:
        fwd = _ref_layer(inp, layer_dirs[0]["w_ih"], layer_dirs[0]["w_hh"],
                         layer_dirs[0]["b"], dot)
        bwd = _ref_layer(inp[::-1], layer_dirs[1]["w_ih"], layer_dirs[1]["w_hh"],
                         layer_dirs[1]["b"], dot)[::-1]
        inp = jnp.concatenate([fwd, bwd], axis=-1)
    last = inp[-1]
    h = dot(last, params["fc_out_w"]) + params["fc_out_b"]
    return dot(h, params["fc_out1_w"]) + params["fc_out1_b"]


# ----------------------------- main ------------------------------------------
if __name__ == "__main__":
    key = jax.random.PRNGKey(0)
    pkey, xkey = jax.random.split(key)
    params = init_params(pkey)
    kparams = pack_params(params)
    x = jax.random.randint(xkey, (SEQ, BATCH), 0, VOCAB, dtype=jnp.int32)

    fwd = jax.jit(lstm_forward)
    out = jax.block_until_ready(fwd(kparams, x))
    assert out.shape == (BATCH, FC2_OUT), out.shape

    # Kernel uses bf16 MXU operands with f32 accumulation.  Check against (a) a reference with
    # identically-rounded matmul operands (tight) and (b) the exact f32 forward (bf16-level tol).
    ref_bf16 = jax.block_until_ready(ref_forward(params, x, jnp.bfloat16))
    ref_f32 = jax.block_until_ready(ref_forward(params, x, None))
    np.testing.assert_allclose(np.asarray(out), np.asarray(ref_bf16), rtol=5e-3, atol=5e-4)
    np.testing.assert_allclose(np.asarray(out), np.asarray(ref_f32), rtol=2e-2, atol=2e-3)
    print("KERNEL_OK")
</pallas_src>

<mosaic_0001>
module attributes {stable_mosaic.version = 11 : i64} {
  func.func @fused_forward_kernel(%arg0: memref<16x1xi32, #tpu.memory_space<vmem>>, %arg1: memref<128x32xf32, #tpu.memory_space<vmem>>, %arg2: memref<240x256xf32, #tpu.memory_space<vmem>>, %arg3: memref<208x128xf32, #tpu.memory_space<vmem>>, %arg4: memref<2x128xf32, #tpu.memory_space<vmem>>, %arg5: memref<16x64xf32, #tpu.memory_space<vmem>>) attributes {dimension_semantics = [], scalar_prefetch = 0 : i64, scratch_operands = 1 : i64, tpu.core_type = #tpu.core_type<tc>} {
    %c0 = arith.constant 0 : index
    %c0_0 = arith.constant 0 : index
    %0 = vector.load %arg0[%c0, %c0_0] : memref<16x1xi32, #tpu.memory_space<vmem>>, vector<16x1xi32>
    %1 = tpu.iota {dimensions = array<i32: 1>} : vector<16x128xi32>
    %2 = vector.broadcast %0 : vector<16x1xi32> to vector<16x128xi32>
    %3 = arith.cmpi eq, %2, %1 : vector<16x128xi32>
    %4 = arith.extui %3 : vector<16x128xi1> to vector<16x128xi32>
    %5 = arith.sitofp %4 : vector<16x128xi32> to vector<16x128xf32>
    %c0_1 = arith.constant 0 : index
    %c0_2 = arith.constant 0 : index
    %6 = vector.load %arg1[%c0_1, %c0_2] : memref<128x32xf32, #tpu.memory_space<vmem>>, vector<128x32xf32>
    %7 = arith.truncf %5 : vector<16x128xf32> to vector<16x128xbf16>
    %8 = arith.truncf %6 : vector<128x32xf32> to vector<128x32xbf16>
    %cst = arith.constant dense<0.000000e+00> : vector<16x32xf32>
    %9 = tpu.matmul %7, %8, %cst {dimension_numbers = #tpu.dot_dimension_numbers<[1], [0], [0], [1], [0, 0, 1, 1], [], []>} : vector<16x128xbf16>, vector<128x32xbf16>, vector<16x32xf32> -> vector<16x32xf32>
    %10 = tpu.iota {dimensions = array<i32: 1>} : vector<2x256xi32>
    %c64_i32 = arith.constant 64 : i32
    %c0_i32 = arith.constant 0 : i32
    %11 = arith.cmpi eq, %c64_i32, %c0_i32 : i32
    %c1_i32 = arith.constant 1 : i32
    %12 = arith.select %11, %c1_i32, %c64_i32 : i32
    %13 = vector.broadcast %12 : i32 to vector<2x256xi32>
    %14 = arith.remsi %10, %13 : vector<2x256xi32>
    %c0_i32_3 = arith.constant 0 : i32
    %15 = vector.broadcast %c0_i32_3 : i32 to vector<2x256xi32>
    %16 = arith.cmpi ne, %14, %15 : vector<2x256xi32>
    %c0_i32_4 = arith.constant 0 : i32
    %17 = vector.broadcast %c0_i32_4 : i32 to vector<2x256xi32>
    %18 = arith.cmpi slt, %14, %17 : vector<2x256xi32>
    %c0_i32_5 = arith.constant 0 : i32
    %19 = arith.cmpi slt, %12, %c0_i32_5 : i32
    %20 = vector.broadcast %19 : i1 to vector<2x256xi1>
    %21 = vector.broadcast %20 : vector<2x256xi1> to vector<2x256xi1>
    %22 = arith.xori %18, %21 : vector<2x256xi1>
    %23 = arith.andi %22, %16 : vector<2x256xi1>
    %24 = vector.broadcast %12 : i32 to vector<2x256xi32>
    %25 = arith.addi %14, %24 : vector<2x256xi32>
    %26 = arith.select %23, %25, %14 : vector<2x256xi1>, vector<2x256xi32>
    %c32_i32 = arith.constant 32 : i32
    %27 = vector.broadcast %c32_i32 : i32 to vector<2x256xi32>
    %28 = arith.cmpi slt, %26, %27 : vector<2x256xi32>
    %c128_i32 = arith.constant 128 : i32
    %29 = vector.broadcast %c128_i32 : i32 to vector<2x256xi32>
    %30 = arith.cmpi sge, %10, %29 : vector<2x256xi32>
    %c192_i32 = arith.constant 192 : i32
    %31 = vector.broadcast %c192_i32 : i32 to vector<2x256xi32>
    %32 = arith.cmpi slt, %10, %31 : vector<2x256xi32>
    %33 = arith.andi %30, %32 : vector<2x256xi1>
    %34 = tpu.iota {dimensions = array<i32: 1>} : vector<2x64xi32>
    %c32_i32_6 = arith.constant 32 : i32
    %35 = vector.broadcast %c32_i32_6 : i32 to vector<2x64xi32>
    %36 = arith.cmpi slt, %34, %35 : vector<2x64xi32>
    %c0_7 = arith.constant 0 : index
    %c0_8 = arith.constant 0 : index
    %37 = vector.load %arg2[%c0_7, %c0_8] : memref<240x256xf32, #tpu.memory_space<vmem>>, vector<32x256xf32>
    %c32 = arith.constant 32 : index
    %c0_9 = arith.constant 0 : index
    %38 = vector.load %arg2[%c32, %c0_9] : memref<240x256xf32, #tpu.memory_space<vmem>>, vector<64x256xf32>
    %c96 = arith.constant 96 : index
    %c0_10 = arith.constant 0 : index
    %39 = vector.load %arg2[%c96, %c0_10] : memref<240x256xf32, #tpu.memory_space<vmem>>, vector<1x256xf32>
    %40 = arith.truncf %37 : vector<32x256xf32> to vector<32x256xbf16>
    %41 = arith.truncf %38 : vector<64x256xf32> to vector<64x256xbf16>
    %42 = arith.truncf %9 : vector<16x32xf32> to vector<16x32xbf16>
    %cst_11 = arith.constant dense<0.000000e+00> : vector<16x256xf32>
    %43 = tpu.matmul %42, %40, %cst_11 {dimension_numbers = #tpu.dot_dimension_numbers<[1], [0], [0], [1], [0, 0, 1, 1], [], []>} : vector<16x32xbf16>, vector<32x256xbf16>, vector<16x256xf32> -> vector<16x256xf32>
    %44 = vector.broadcast %39 : vector<1x256xf32> to vector<16x256xf32>
    %45 = arith.addf %43, %44 : vector<16x256xf32>
    %cst_12 = arith.constant 0.000000e+00 : f32
    %46 = vector.broadcast %cst_12 : f32 to vector<2x64xf32>
    %cst_13 = arith.constant 0.000000e+00 : f32
    %47 = vector.broadcast %cst_13 : f32 to vector<2x64xf32>
    %48 = vector.extract_strided_slice %45 {offsets = [0, 0], sizes = [2, 256], strides = [1, 1]} : vector<16x256xf32> to vector<2x256xf32>
    %49 = vector.extract_strided_slice %45 {offsets = [14, 0], sizes = [2, 256], strides = [1, 1]} : vector<16x256xf32> to vector<2x256xf32>
    %50 = arith.select %28, %48, %49 : vector<2x256xi1>, vector<2x256xf32>
    %51 = arith.truncf %46 : vector<2x64xf32> to vector<2x64xbf16>
    %cst_14 = arith.constant dense<0.000000e+00> : vector<2x256xf32>
    %52 = tpu.matmul %51, %41, %cst_14 {dimension_numbers = #tpu.dot_dimension_numbers<[1], [0], [0], [1], [0, 0, 1, 1], [], []>} : vector<2x64xbf16>, vector<64x256xbf16>, vector<2x256xf32> -> vector<2x256xf32>
    %53 = arith.addf %50, %52 : vector<2x256xf32>
    %54 = arith.negf %53 : vector<2x256xf32>
    %55 = math.exp %54 : vector<2x256xf32>
    %cst_15 = arith.constant 1.000000e+00 : f32
    %56 = vector.broadcast %cst_15 : f32 to vector<2x256xf32>
    %57 = arith.addf %56, %55 : vector<2x256xf32>
    %58 = arith.divf %56, %57 : vector<2x256xf32>
    %59 = math.tanh %53 : vector<2x256xf32>
    %60 = arith.select %33, %59, %58 : vector<2x256xi1>, vector<2x256xf32>
    %61 = vector.extract_strided_slice %60 {offsets = [0, 0], sizes = [2, 64], strides = [1, 1]} : vector<2x256xf32> to vector<2x64xf32>
    %62 = vector.extract_strided_slice %60 {offsets = [0, 64], sizes = [2, 64], strides = [1, 1]} : vector<2x256xf32> to vector<2x64xf32>
    %63 = vector.extract_strided_slice %60 {offsets = [0, 128], sizes = [2, 64], strides = [1, 1]} : vector<2x256xf32> to vector<2x64xf32>
    %64 = vector.extract_strided_slice %60 {offsets = [0, 192], sizes = [2, 64], strides = [1, 1]} : vector<2x256xf32> to vector<2x64xf32>
    %65 = arith.mulf %62, %47 : vector<2x64xf32>
    %66 = arith.mulf %61, %63 : vector<2x64xf32>
    %67 = arith.addf %65, %66 : vector<2x64xf32>
    %68 = math.tanh %67 : vector<2x64xf32>
    %69 = arith.mulf %64, %68 : vector<2x64xf32>
    %70 = vector.extract_strided_slice %69 {offsets = [0, 0], sizes = [2, 32], strides = [1, 1]} : vector<2x64xf32> to vector<2x32xf32>
    %c0_16 = arith.constant 0 : index
    %c0_17 = arith.constant 0 : index
    %71 = vector.load %arg5[%c0_16, %c0_17] : memref<16x64xf32, #tpu.memory_space<vmem>>, vector<2x32xf32>
    tpu.vector_store %arg5[%c0_16, %c0_17], %70 {strides = array<i32>} : memref<16x64xf32, #tpu.memory_space<vmem>>, vector<2x32xf32>,
    %72 = vector.extract_strided_slice %69 {offsets = [0, 32], sizes = [2, 32], strides = [1, 1]} : vector<2x64xf32> to vector<2x32xf32>
    %c14 = arith.constant 14 : index
    %c32_18 = arith.constant 32 : index
    %73 = vector.load %arg5[%c14, %c32_18] : memref<16x64xf32, #tpu.memory_space<vmem>>, vector<2x32xf32>
    tpu.vector_store %arg5[%c14, %c32_18], %72 {strides = array<i32>} : memref<16x64xf32, #tpu.memory_space<vmem>>, vector<2x32xf32>,
    %74 = vector.extract_strided_slice %45 {offsets = [2, 0], sizes = [2, 256], strides = [1, 1]} : vector<16x256xf32> to vector<2x256xf32>
    %75 = vector.extract_strided_slice %45 {offsets = [12, 0], sizes = [2, 256], strides = [1, 1]} : vector<16x256xf32> to vector<2x256xf32>
    %76 = arith.select %28, %74, %75 : vector<2x256xi1>, vector<2x256xf32>
    %77 = arith.truncf %69 : vector<2x64xf32> to vector<2x64xbf16>
    %cst_19 = arith.constant dense<0.000000e+00> : vector<2x256xf32>
    %78 = tpu.matmul %77, %41, %cst_19 {dimension_numbers = #tpu.dot_dimension_numbers<[1], [0], [0], [1], [0, 0, 1, 1], [], []>} : vector<2x64xbf16>, vector<64x256xbf16>, vector<2x256xf32> -> vector<2x256xf32>
    %79 = arith.addf %76, %78 : vector<2x256xf32>
    %80 = arith.negf %79 : vector<2x256xf32>
    %81 = math.exp %80 : vector<2x256xf32>
    %cst_20 = arith.constant 1.000000e+00 : f32
    %82 = vector.broadcast %cst_20 : f32 to vector<2x256xf32>
    %83 = arith.addf %82, %81 : vector<2x256xf32>
    %84 = arith.divf %82, %83 : vector<2x256xf32>
    %85 = math.tanh %79 : vector<2x256xf32>
    %86 = arith.select %33, %85, %84 : vector<2x256xi1>, vector<2x256xf32>
    %87 = vector.extract_strided_slice %86 {offsets = [0, 0], sizes = [2, 64], strides = [1, 1]} : vector<2x256xf32> to vector<2x64xf32>
    %88 = vector.extract_strided_slice %86 {offsets = [0, 64], sizes = [2, 64], strides = [1, 1]} : vector<2x256xf32> to vector<2x64xf32>
    %89 = vector.extract_strided_slice %86 {offsets = [0, 128], sizes = [2, 64], strides = [1, 1]} : vector<2x256xf32> to vector<2x64xf32>
    %90 = vector.extract_strided_slice %86 {offsets = [0, 192], sizes = [2, 64], strides = [1, 1]} : vector<2x256xf32> to vector<2x64xf32>
    %91 = arith.mulf %88, %67 : vector<2x64xf32>
    %92 = arith.mulf %87, %89 : vector<2x64xf32>
    %93 = arith.addf %91, %92 : vector<2x64xf32>
    %94 = math.tanh %93 : vector<2x64xf32>
    %95 = arith.mulf %90, %94 : vector<2x64xf32>
    %96 = vector.extract_strided_slice %95 {offsets = [0, 0], sizes = [2, 32], strides = [1, 1]} : vector<2x64xf32> to vector<2x32xf32>
    %c2 = arith.constant 2 : index
    %c0_21 = arith.constant 0 : index
    %97 = vector.load %arg5[%c2, %c0_21] : memref<16x64xf32, #tpu.memory_space<vmem>>, vector<2x32xf32>
    tpu.vector_store %arg5[%c2, %c0_21], %96 {strides = array<i32>} : memref<16x64xf32, #tpu.memory_space<vmem>>, vector<2x32xf32>,
    %98 = vector.extract_strided_slice %95 {offsets = [0, 32], sizes = [2, 32], strides = [1, 1]} : vector<2x64xf32> to vector<2x32xf32>
    %c12 = arith.constant 12 : index
    %c32_22 = arith.constant 32 : index
    %99 = vector.load %arg5[%c12, %c32_22] : memref<16x64xf32, #tpu.memory_space<vmem>>, vector<2x32xf32>
    tpu.vector_store %arg5[%c12, %c32_22], %98 {strides = array<i32>} : memref<16x64xf32, #tpu.memory_space<vmem>>, vector<2x32xf32>,
    %100 = vector.extract_strided_slice %45 {offsets = [4, 0], sizes = [2, 256], strides = [1, 1]} : vector<16x256xf32> to vector<2x256xf32>
    %101 = vector.extract_strided_slice %45 {offsets = [10, 0], sizes = [2, 256], strides = [1, 1]} : vector<16x256xf32> to vector<2x256xf32>
    %102 = arith.select %28, %100, %101 : vector<2x256xi1>, vector<2x256xf32>
    %103 = arith.truncf %95 : vector<2x64xf32> to vector<2x64xbf16>
    %cst_23 = arith.constant dense<0.000000e+00> : vector<2x256xf32>
    %104 = tpu.matmul %103, %41, %cst_23 {dimension_numbers = #tpu.dot_dimension_numbers<[1], [0], [0], [1], [0, 0, 1, 1], [], []>} : vector<2x64xbf16>, vector<64x256xbf16>, vector<2x256xf32> -> vector<2x256xf32>
    %105 = arith.addf %102, %104 : vector<2x256xf32>
    %106 = arith.negf %105 : vector<2x256xf32>
    %107 = math.exp %106 : vector<2x256xf32>
    %cst_24 = arith.constant 1.000000e+00 : f32
    %108 = vector.broadcast %cst_24 : f32 to vector<2x256xf32>
    %109 = arith.addf %108, %107 : vector<2x256xf32>
    %110 = arith.divf %108, %109 : vector<2x256xf32>
    %111 = math.tanh %105 : vector<2x256xf32>
    %112 = arith.select %33, %111, %110 : vector<2x256xi1>, vector<2x256xf32>
    %113 = vector.extract_strided_slice %112 {offsets = [0, 0], sizes = [2, 64], strides = [1, 1]} : vector<2x256xf32> to vector<2x64xf32>
    %114 = vector.extract_strided_slice %112 {offsets = [0, 64], sizes = [2, 64], strides = [1, 1]} : vector<2x256xf32> to vector<2x64xf32>
    %115 = vector.extract_strided_slice %112 {offsets = [0, 128], sizes = [2, 64], strides = [1, 1]} : vector<2x256xf32> to vector<2x64xf32>
    %116 = vector.extract_strided_slice %112 {offsets = [0, 192], sizes = [2, 64], strides = [1, 1]} : vector<2x256xf32> to vector<2x64xf32>
    %117 = arith.mulf %114, %93 : vector<2x64xf32>
    %118 = arith.mulf %113, %115 : vector<2x64xf32>
    %119 = arith.addf %117, %118 : vector<2x64xf32>
    %120 = math.tanh %119 : vector<2x64xf32>
    %121 = arith.mulf %116, %120 : vector<2x64xf32>
    %122 = vector.extract_strided_slice %121 {offsets = [0, 0], sizes = [2, 32], strides = [1, 1]} : vector<2x64xf32> to vector<2x32xf32>
    %c4 = arith.constant 4 : index
    %c0_25 = arith.constant 0 : index
    %123 = vector.load %arg5[%c4, %c0_25] : memref<16x64xf32, #tpu.memory_space<vmem>>, vector<2x32xf32>
    tpu.vector_store %arg5[%c4, %c0_25], %122 {strides = array<i32>} : memref<16x64xf32, #tpu.memory_space<vmem>>, vector<2x32xf32>,
    %124 = vector.extract_strided_slice %121 {offsets = [0, 32], sizes = [2, 32], strides = [1, 1]} : vector<2x64xf32> to vector<2x32xf32>
    %c10 = arith.constant 10 : index
    %c32_26 = arith.constant 32 : index
    %125 = vector.load %arg5[%c10, %c32_26] : memref<16x64xf32, #tpu.memory_space<vmem>>, vector<2x32xf32>
    tpu.vector_store %arg5[%c10, %c32_26], %124 {strides = array<i32>} : memref<16x64xf32, #tpu.memory_space<vmem>>, vector<2x32xf32>,
    %126 = vector.extract_strided_slice %45 {offsets = [6, 0], sizes = [2, 256], strides = [1, 1]} : vector<16x256xf32> to vector<2x256xf32>
    %127 = vector.extract_strided_slice %45 {offsets = [8, 0], sizes = [2, 256], strides = [1, 1]} : vector<16x256xf32> to vector<2x256xf32>
    %128 = arith.select %28, %126, %127 : vector<2x256xi1>, vector<2x256xf32>
    %129 = arith.truncf %121 : vector<2x64xf32> to vector<2x64xbf16>
    %cst_27 = arith.constant dense<0.000000e+00> : vector<2x256xf32>
    %130 = tpu.matmul %129, %41, %cst_27 {dimension_numbers = #tpu.dot_dimension_numbers<[1], [0], [0], [1], [0, 0, 1, 1], [], []>} : vector<2x64xbf16>, vector<64x256xbf16>, vector<2x256xf32> -> vector<2x256xf32>
    %131 = arith.addf %128, %130 : vector<2x256xf32>
    %132 = arith.negf %131 : vector<2x256xf32>
    %133 = math.exp %132 : vector<2x256xf32>
    %cst_28 = arith.constant 1.000000e+00 : f32
    %134 = vector.broadcast %cst_28 : f32 to vector<2x256xf32>
    %135 = arith.addf %134, %133 : vector<2x256xf32>
    %136 = arith.divf %134, %135 : vector<2x256xf32>
    %137 = math.tanh %131 : vector<2x256xf32>
    %138 = arith.select %33, %137, %136 : vector<2x256xi1>, vector<2x256xf32>
    %139 = vector.extract_strided_slice %138 {offsets = [0, 0], sizes = [2, 64], strides = [1, 1]} : vector<2x256xf32> to vector<2x64xf32>
    %140 = vector.extract_strided_slice %138 {offsets = [0, 64], sizes = [2, 64], strides = [1, 1]} : vector<2x256xf32> to vector<2x64xf32>
    %141 = vector.extract_strided_slice %138 {offsets = [0, 128], sizes = [2, 64], strides = [1, 1]} : vector<2x256xf32> to vector<2x64xf32>
    %142 = vector.extract_strided_slice %138 {offsets = [0, 192], sizes = [2, 64], strides = [1, 1]} : vector<2x256xf32> to vector<2x64xf32>
    %143 = arith.mulf %140, %119 : vector<2x64xf32>
    %144 = arith.mulf %139, %141 : vector<2x64xf32>
    %145 = arith.addf %143, %144 : vector<2x64xf32>
    %146 = math.tanh %145 : vector<2x64xf32>
    %147 = arith.mulf %142, %146 : vector<2x64xf32>
    %148 = vector.extract_strided_slice %147 {offsets = [0, 0], sizes = [2, 32], strides = [1, 1]} : vector<2x64xf32> to vector<2x32xf32>
    %c6 = arith.constant 6 : index
    %c0_29 = arith.constant 0 : index
    %149 = vector.load %arg5[%c6, %c0_29] : memref<16x64xf32, #tpu.memory_space<vmem>>, vector<2x32xf32>
    tpu.vector_store %arg5[%c6, %c0_29], %148 {strides = array<i32>} : memref<16x64xf32, #tpu.memory_space<vmem>>, vector<2x32xf32>,
    %150 = vector.extract_strided_slice %147 {offsets = [0, 32], sizes = [2, 32], strides = [1, 1]} : vector<2x64xf32> to vector<2x32xf32>
    %c8 = arith.constant 8 : index
    %c32_30 = arith.constant 32 : index
    %151 = vector.load %arg5[%c8, %c32_30] : memref<16x64xf32, #tpu.memory_space<vmem>>, vector<2x32xf32>
    tpu.vector_store %arg5[%c8, %c32_30], %150 {strides = array<i32>} : memref<16x64xf32, #tpu.memory_space<vmem>>, vector<2x32xf32>,
    %152 = vector.extract_strided_slice %45 {offsets = [8, 0], sizes = [2, 256], strides = [1, 1]} : vector<16x256xf32> to vector<2x256xf32>
    %153 = vector.extract_strided_slice %45 {offsets = [6, 0], sizes = [2, 256], strides = [1, 1]} : vector<16x256xf32> to vector<2x256xf32>
    %154 = arith.select %28, %152, %153 : vector<2x256xi1>, vector<2x256xf32>
    %155 = arith.truncf %147 : vector<2x64xf32> to vector<2x64xbf16>
    %cst_31 = arith.constant dense<0.000000e+00> : vector<2x256xf32>
    %156 = tpu.matmul %155, %41, %cst_31 {dimension_numbers = #tpu.dot_dimension_numbers<[1], [0], [0], [1], [0, 0, 1, 1], [], []>} : vector<2x64xbf16>, vector<64x256xbf16>, vector<2x256xf32> -> vector<2x256xf32>
    %157 = arith.addf %154, %156 : vector<2x256xf32>
    %158 = arith.negf %157 : vector<2x256xf32>
    %159 = math.exp %158 : vector<2x256xf32>
    %cst_32 = arith.constant 1.000000e+00 : f32
    %160 = vector.broadcast %cst_32 : f32 to vector<2x256xf32>
    %161 = arith.addf %160, %159 : vector<2x256xf32>
    %162 = arith.divf %160, %161 : vector<2x256xf32>
    %163 = math.tanh %157 : vector<2x256xf32>
    %164 = arith.select %33, %163, %162 : vector<2x256xi1>, vector<2x256xf32>
    %165 = vector.extract_strided_slice %164 {offsets = [0, 0], sizes = [2, 64], strides = [1, 1]} : vector<2x256xf32> to vector<2x64xf32>
    %166 = vector.extract_strided_slice %164 {offsets = [0, 64], sizes = [2, 64], strides = [1, 1]} : vector<2x256xf32> to vector<2x64xf32>
    %167 = vector.extract_strided_slice %164 {offsets = [0, 128], sizes = [2, 64], strides = [1, 1]} : vector<2x256xf32> to vector<2x64xf32>
    %168 = vector.extract_strided_slice %164 {offsets = [0, 192], sizes = [2, 64], strides = [1, 1]} : vector<2x256xf32> to vector<2x64xf32>
    %169 = arith.mulf %166, %145 : vector<2x64xf32>
    %170 = arith.mulf %165, %167 : vector<2x64xf32>
    %171 = arith.addf %169, %170 : vector<2x64xf32>
    %172 = math.tanh %171 : vector<2x64xf32>
    %173 = arith.mulf %168, %172 : vector<2x64xf32>
    %174 = vector.extract_strided_slice %173 {offsets = [0, 0], sizes = [2, 32], strides = [1, 1]} : vector<2x64xf32> to vector<2x32xf32>
    %c8_33 = arith.constant 8 : index
    %c0_34 = arith.constant 0 : index
    %175 = vector.load %arg5[%c8_33, %c0_34] : memref<16x64xf32, #tpu.memory_space<vmem>>, vector<2x32xf32>
    tpu.vector_store %arg5[%c8_33, %c0_34], %174 {strides = array<i32>} : memref<16x64xf32, #tpu.memory_space<vmem>>, vector<2x32xf32>,
    %176 = vector.extract_strided_slice %173 {offsets = [0, 32], sizes = [2, 32], strides = [1, 1]} : vector<2x64xf32> to vector<2x32xf32>
    %c6_35 = arith.constant 6 : index
    %c32_36 = arith.constant 32 : index
    %177 = vector.load %arg5[%c6_35, %c32_36] : memref<16x64xf32, #tpu.memory_space<vmem>>, vector<2x32xf32>
    tpu.vector_store %arg5[%c6_35, %c32_36], %176 {strides = array<i32>} : memref<16x64xf32, #tpu.memory_space<vmem>>, vector<2x32xf32>,
    %178 = vector.extract_strided_slice %45 {offsets = [10, 0], sizes = [2, 256], strides = [1, 1]} : vector<16x256xf32> to vector<2x256xf32>
    %179 = vector.extract_strided_slice %45 {offsets = [4, 0], sizes = [2, 256], strides = [1, 1]} : vector<16x256xf32> to vector<2x256xf32>
    %180 = arith.select %28, %178, %179 : vector<2x256xi1>, vector<2x256xf32>
    %181 = arith.truncf %173 : vector<2x64xf32> to vector<2x64xbf16>
    %cst_37 = arith.constant dense<0.000000e+00> : vector<2x256xf32>
    %182 = tpu.matmul %181, %41, %cst_37 {dimension_numbers = #tpu.dot_dimension_numbers<[1], [0], [0], [1], [0, 0, 1, 1], [], []>} : vector<2x64xbf16>, vector<64x256xbf16>, vector<2x256xf32> -> vector<2x256xf32>
    %183 = arith.addf %180, %182 : vector<2x256xf32>
    %184 = arith.negf %183 : vector<2x256xf32>
    %185 = math.exp %184 : vector<2x256xf32>
    %cst_38 = arith.constant 1.000000e+00 : f32
    %186 = vector.broadcast %cst_38 : f32 to vector<2x256xf32>
    %187 = arith.addf %186, %185 : vector<2x256xf32>
    %188 = arith.divf %186, %187 : vector<2x256xf32>
    %189 = math.tanh %183 : vector<2x256xf32>
    %190 = arith.select %33, %189, %188 : vector<2x256xi1>, vector<2x256xf32>
    %191 = vector.extract_strided_slice %190 {offsets = [0, 0], sizes = [2, 64], strides = [1, 1]} : vector<2x256xf32> to vector<2x64xf32>
    %192 = vector.extract_strided_slice %190 {offsets = [0, 64], sizes = [2, 64], strides = [1, 1]} : vector<2x256xf32> to vector<2x64xf32>
    %193 = vector.extract_strided_slice %190 {offsets = [0, 128], sizes = [2, 64], strides = [1, 1]} : vector<2x256xf32> to vector<2x64xf32>
    %194 = vector.extract_strided_slice %190 {offsets = [0, 192], sizes = [2, 64], strides = [1, 1]} : vector<2x256xf32> to vector<2x64xf32>
    %195 = arith.mulf %192, %171 : vector<2x64xf32>
    %196 = arith.mulf %191, %193 : vector<2x64xf32>
    %197 = arith.addf %195, %196 : vector<2x64xf32>
    %198 = math.tanh %197 : vector<2x64xf32>
    %199 = arith.mulf %194, %198 : vector<2x64xf32>
    %200 = vector.extract_strided_slice %199 {offsets = [0, 0], sizes = [2, 32], strides = [1, 1]} : vector<2x64xf32> to vector<2x32xf32>
    %c10_39 = arith.constant 10 : index
    %c0_40 = arith.constant 0 : index
    %201 = vector.load %arg5[%c10_39, %c0_40] : memref<16x64xf32, #tpu.memory_space<vmem>>, vector<2x32xf32>
    tpu.vector_store %arg5[%c10_39, %c0_40], %200 {strides = array<i32>} : memref<16x64xf32, #tpu.memory_space<vmem>>, vector<2x32xf32>,
    %202 = vector.extract_strided_slice %199 {offsets = [0, 32], sizes = [2, 32], strides = [1, 1]} : vector<2x64xf32> to vector<2x32xf32>
    %c4_41 = arith.constant 4 : index
    %c32_42 = arith.constant 32 : index
    %203 = vector.load %arg5[%c4_41, %c32_42] : memref<16x64xf32, #tpu.memory_space<vmem>>, vector<2x32xf32>
    tpu.vector_store %arg5[%c4_41, %c32_42], %202 {strides = array<i32>} : memref<16x64xf32, #tpu.memory_space<vmem>>, vector<2x32xf32>,
    %204 = vector.extract_strided_slice %45 {offsets = [12, 0], sizes = [2, 256], strides = [1, 1]} : vector<16x256xf32> to vector<2x256xf32>
    %205 = vector.extract_strided_slice %45 {offsets = [2, 0], sizes = [2, 256], strides = [1, 1]} : vector<16x256xf32> to vector<2x256xf32>
    %206 = arith.select %28, %204, %205 : vector<2x256xi1>, vector<2x256xf32>
    %207 = arith.truncf %199 : vector<2x64xf32> to vector<2x64xbf16>
    %cst_43 = arith.constant dense<0.000000e+00> : vector<2x256xf32>
    %208 = tpu.matmul %207, %41, %cst_43 {dimension_numbers = #tpu.dot_dimension_numbers<[1], [0], [0], [1], [0, 0, 1, 1], [], []>} : vector<2x64xbf16>, vector<64x256xbf16>, vector<2x256xf32> -> vector<2x256xf32>
    %209 = arith.addf %206, %208 : vector<2x256xf32>
    %210 = arith.negf %209 : vector<2x256xf32>
    %211 = math.exp %210 : vector<2x256xf32>
    %cst_44 = arith.constant 1.000000e+00 : f32
    %212 = vector.broadcast %cst_44 : f32 to vector<2x256xf32>
    %213 = arith.addf %212, %211 : vector<2x256xf32>
    %214 = arith.divf %212, %213 : vector<2x256xf32>
    %215 = math.tanh %209 : vector<2x256xf32>
    %216 = arith.select %33, %215, %214 : vector<2x256xi1>, vector<2x256xf32>
    %217 = vector.extract_strided_slice %216 {offsets = [0, 0], sizes = [2, 64], strides = [1, 1]} : vector<2x256xf32> to vector<2x64xf32>
    %218 = vector.extract_strided_slice %216 {offsets = [0, 64], sizes = [2, 64], strides = [1, 1]} : vector<2x256xf32> to vector<2x64xf32>
    %219 = vector.extract_strided_slice %216 {offsets = [0, 128], sizes = [2, 64], strides = [1, 1]} : vector<2x256xf32> to vector<2x64xf32>
    %220 = vector.extract_strided_slice %216 {offsets = [0, 192], sizes = [2, 64], strides = [1, 1]} : vector<2x256xf32> to vector<2x64xf32>
    %221 = arith.mulf %218, %197 : vector<2x64xf32>
    %222 = arith.mulf %217, %219 : vector<2x64xf32>
    %223 = arith.addf %221, %222 : vector<2x64xf32>
    %224 = math.tanh %223 : vector<2x64xf32>
    %225 = arith.mulf %220, %224 : vector<2x64xf32>
    %226 = vector.extract_strided_slice %225 {offsets = [0, 0], sizes = [2, 32], strides = [1, 1]} : vector<2x64xf32> to vector<2x32xf32>
    %c12_45 = arith.constant 12 : index
    %c0_46 = arith.constant 0 : index
    %227 = vector.load %arg5[%c12_45, %c0_46] : memref<16x64xf32, #tpu.memory_space<vmem>>, vector<2x32xf32>
    tpu.vector_store %arg5[%c12_45, %c0_46], %226 {strides = array<i32>} : memref<16x64xf32, #tpu.memory_space<vmem>>, vector<2x32xf32>,
    %228 = vector.extract_strided_slice %225 {offsets = [0, 32], sizes = [2, 32], strides = [1, 1]} : vector<2x64xf32> to vector<2x32xf32>
    %c2_47 = arith.constant 2 : index
    %c32_48 = arith.constant 32 : index
    %229 = vector.load %arg5[%c2_47, %c32_48] : memref<16x64xf32, #tpu.memory_space<vmem>>, vector<2x32xf32>
    tpu.vector_store %arg5[%c2_47, %c32_48], %228 {strides = array<i32>} : memref<16x64xf32, #tpu.memory_space<vmem>>, vector<2x32xf32>,
    %230 = vector.extract_strided_slice %45 {offsets = [14, 0], sizes = [2, 256], strides = [1, 1]} : vector<16x256xf32> to vector<2x256xf32>
    %231 = vector.extract_strided_slice %45 {offsets = [0, 0], sizes = [2, 256], strides = [1, 1]} : vector<16x256xf32> to vector<2x256xf32>
    %232 = arith.select %28, %230, %231 : vector<2x256xi1>, vector<2x256xf32>
    %233 = arith.truncf %225 : vector<2x64xf32> to vector<2x64xbf16>
    %cst_49 = arith.constant dense<0.000000e+00> : vector<2x256xf32>
    %234 = tpu.matmul %233, %41, %cst_49 {dimension_numbers = #tpu.dot_dimension_numbers<[1], [0], [0], [1], [0, 0, 1, 1], [], []>} : vector<2x64xbf16>, vector<64x256xbf16>, vector<2x256xf32> -> vector<2x256xf32>
    %235 = arith.addf %232, %234 : vector<2x256xf32>
    %236 = arith.negf %235 : vector<2x256xf32>
    %237 = math.exp %236 : vector<2x256xf32>
    %cst_50 = arith.constant 1.000000e+00 : f32
    %238 = vector.broadcast %cst_50 : f32 to vector<2x256xf32>
    %239 = arith.addf %238, %237 : vector<2x256xf32>
    %240 = arith.divf %238, %239 : vector<2x256xf32>
    %241 = math.tanh %235 : vector<2x256xf32>
    %242 = arith.select %33, %241, %240 : vector<2x256xi1>, vector<2x256xf32>
    %243 = vector.extract_strided_slice %242 {offsets = [0, 0], sizes = [2, 64], strides = [1, 1]} : vector<2x256xf32> to vector<2x64xf32>
    %244 = vector.extract_strided_slice %242 {offsets = [0, 64], sizes = [2, 64], strides = [1, 1]} : vector<2x256xf32> to vector<2x64xf32>
    %245 = vector.extract_strided_slice %242 {offsets = [0, 128], sizes = [2, 64], strides = [1, 1]} : vector<2x256xf32> to vector<2x64xf32>
    %246 = vector.extract_strided_slice %242 {offsets = [0, 192], sizes = [2, 64], strides = [1, 1]} : vector<2x256xf32> to vector<2x64xf32>
    %247 = arith.mulf %244, %223 : vector<2x64xf32>
    %248 = arith.mulf %243, %245 : vector<2x64xf32>
    %249 = arith.addf %247, %248 : vector<2x64xf32>
    %250 = math.tanh %249 : vector<2x64xf32>
    %251 = arith.mulf %246, %250 : vector<2x64xf32>
    %252 = vector.extract_strided_slice %251 {offsets = [0, 0], sizes = [2, 32], strides = [1, 1]} : vector<2x64xf32> to vector<2x32xf32>
    %c14_51 = arith.constant 14 : index
    %c0_52 = arith.constant 0 : index
    %253 = vector.load %arg5[%c14_51, %c0_52] : memref<16x64xf32, #tpu.memory_space<vmem>>, vector<2x32xf32>
    tpu.vector_store %arg5[%c14_51, %c0_52], %252 {strides = array<i32>} : memref<16x64xf32, #tpu.memory_space<vmem>>, vector<2x32xf32>,
    %254 = vector.extract_strided_slice %251 {offsets = [0, 32], sizes = [2, 32], strides = [1, 1]} : vector<2x64xf32> to vector<2x32xf32>
    %c0_53 = arith.constant 0 : index
    %c32_54 = arith.constant 32 : index
    %255 = vector.load %arg5[%c0_53, %c32_54] : memref<16x64xf32, #tpu.memory_space<vmem>>, vector<2x32xf32>
    tpu.vector_store %arg5[%c0_53, %c32_54], %254 {strides = array<i32>} : memref<16x64xf32, #tpu.memory_space<vmem>>, vector<2x32xf32>,
    %c0_55 = arith.constant 0 : index
    %c0_56 = arith.constant 0 : index
    %256 = vector.load %arg5[%c0_55, %c0_56] : memref<16x64xf32, #tpu.memory_space<vmem>>, vector<16x64xf32>
    %c104 = arith.constant 104 : index
    %c0_57 = arith.constant 0 : index
    %257 = vector.load %arg2[%c104, %c0_57] : memref<240x256xf32, #tpu.memory_space<vmem>>, vector<64x256xf32>
    %c168 = arith.constant 168 : index
    %c0_58 = arith.constant 0 : index
    %258 = vector.load %arg2[%c168, %c0_58] : memref<240x256xf32, #tpu.memory_space<vmem>>, vector<64x256xf32>
    %c232 = arith.constant 232 : index
    %c0_59 = arith.constant 0 : index
    %259 = vector.load %arg2[%c232, %c0_59] : memref<240x256xf32, #tpu.memory_space<vmem>>, vector<1x256xf32>
    %260 = arith.truncf %257 : vector<64x256xf32> to vector<64x256xbf16>
    %261 = arith.truncf %258 : vector<64x256xf32> to vector<64x256xbf16>
    %262 = arith.truncf %256 : vector<16x64xf32> to vector<16x64xbf16>
    %cst_60 = arith.constant dense<0.000000e+00> : vector<16x256xf32>
    %263 = tpu.matmul %262, %260, %cst_60 {dimension_numbers = #tpu.dot_dimension_numbers<[1], [0], [0], [1], [0, 0, 1, 1], [], []>} : vector<16x64xbf16>, vector<64x256xbf16>, vector<16x256xf32> -> vector<16x256xf32>
    %264 = vector.broadcast %259 : vector<1x256xf32> to vector<16x256xf32>
    %265 = arith.addf %263, %264 : vector<16x256xf32>
    %cst_61 = arith.constant 0.000000e+00 : f32
    %266 = vector.broadcast %cst_61 : f32 to vector<2x64xf32>
    %cst_62 = arith.constant 0.000000e+00 : f32
    %267 = vector.broadcast %cst_62 : f32 to vector<2x64xf32>
    %268 = vector.extract_strided_slice %265 {offsets = [0, 0], sizes = [2, 256], strides = [1, 1]} : vector<16x256xf32> to vector<2x256xf32>
    %269 = vector.extract_strided_slice %265 {offsets = [14, 0], sizes = [2, 256], strides = [1, 1]} : vector<16x256xf32> to vector<2x256xf32>
    %270 = arith.select %28, %268, %269 : vector<2x256xi1>, vector<2x256xf32>
    %271 = arith.truncf %266 : vector<2x64xf32> to vector<2x64xbf16>
    %cst_63 = arith.constant dense<0.000000e+00> : vector<2x256xf32>
    %272 = tpu.matmul %271, %261, %cst_63 {dimension_numbers = #tpu.dot_dimension_numbers<[1], [0], [0], [1], [0, 0, 1, 1], [], []>} : vector<2x64xbf16>, vector<64x256xbf16>, vector<2x256xf32> -> vector<2x256xf32>
    %273 = arith.addf %270, %272 : vector<2x256xf32>
    %274 = arith.negf %273 : vector<2x256xf32>
    %275 = math.exp %274 : vector<2x256xf32>
    %cst_64 = arith.constant 1.000000e+00 : f32
    %276 = vector.broadcast %cst_64 : f32 to vector<2x256xf32>
    %277 = arith.addf %276, %275 : vector<2x256xf32>
    %278 = arith.divf %276, %277 : vector<2x256xf32>
    %279 = math.tanh %273 : vector<2x256xf32>
    %280 = arith.select %33, %279, %278 : vector<2x256xi1>, vector<2x256xf32>
    %281 = vector.extract_strided_slice %280 {offsets = [0, 0], sizes = [2, 64], strides = [1, 1]} : vector<2x256xf32> to vector<2x64xf32>
    %282 = vector.extract_strided_slice %280 {offsets = [0, 64], sizes = [2, 64], strides = [1, 1]} : vector<2x256xf32> to vector<2x64xf32>
    %283 = vector.extract_strided_slice %280 {offsets = [0, 128], sizes = [2, 64], strides = [1, 1]} : vector<2x256xf32> to vector<2x64xf32>
    %284 = vector.extract_strided_slice %280 {offsets = [0, 192], sizes = [2, 64], strides = [1, 1]} : vector<2x256xf32> to vector<2x64xf32>
    %285 = arith.mulf %282, %267 : vector<2x64xf32>
    %286 = arith.mulf %281, %283 : vector<2x64xf32>
    %287 = arith.addf %285, %286 : vector<2x64xf32>
    %288 = math.tanh %287 : vector<2x64xf32>
    %289 = arith.mulf %284, %288 : vector<2x64xf32>
    %290 = vector.extract_strided_slice %265 {offsets = [2, 0], sizes = [2, 256], strides = [1, 1]} : vector<16x256xf32> to vector<2x256xf32>
    %291 = vector.extract_strided_slice %265 {offsets = [12, 0], sizes = [2, 256], strides = [1, 1]} : vector<16x256xf32> to vector<2x256xf32>
    %292 = arith.select %28, %290, %291 : vector<2x256xi1>, vector<2x256xf32>
    %293 = arith.truncf %289 : vector<2x64xf32> to vector<2x64xbf16>
    %cst_65 = arith.constant dense<0.000000e+00> : vector<2x256xf32>
    %294 = tpu.matmul %293, %261, %cst_65 {dimension_numbers = #tpu.dot_dimension_numbers<[1], [0], [0], [1], [0, 0, 1, 1], [], []>} : vector<2x64xbf16>, vector<64x256xbf16>, vector<2x256xf32> -> vector<2x256xf32>
    %295 = arith.addf %292, %294 : vector<2x256xf32>
    %296 = arith.negf %295 : vector<2x256xf32>
    %297 = math.exp %296 : vector<2x256xf32>
    %cst_66 = arith.constant 1.000000e+00 : f32
    %298 = vector.broadcast %cst_66 : f32 to vector<2x256xf32>
    %299 = arith.addf %298, %297 : vector<2x256xf32>
    %300 = arith.divf %298, %299 : vector<2x256xf32>
    %301 = math.tanh %295 : vector<2x256xf32>
    %302 = arith.select %33, %301, %300 : vector<2x256xi1>, vector<2x256xf32>
    %303 = vector.extract_strided_slice %302 {offsets = [0, 0], sizes = [2, 64], strides = [1, 1]} : vector<2x256xf32> to vector<2x64xf32>
    %304 = vector.extract_strided_slice %302 {offsets = [0, 64], sizes = [2, 64], strides = [1, 1]} : vector<2x256xf32> to vector<2x64xf32>
    %305 = vector.extract_strided_slice %302 {offsets = [0, 128], sizes = [2, 64], strides = [1, 1]} : vector<2x256xf32> to vector<2x64xf32>
    %306 = vector.extract_strided_slice %302 {offsets = [0, 192], sizes = [2, 64], strides = [1, 1]} : vector<2x256xf32> to vector<2x64xf32>
    %307 = arith.mulf %304, %287 : vector<2x64xf32>
    %308 = arith.mulf %303, %305 : vector<2x64xf32>
    %309 = arith.addf %307, %308 : vector<2x64xf32>
    %310 = math.tanh %309 : vector<2x64xf32>
    %311 = arith.mulf %306, %310 : vector<2x64xf32>
    %312 = vector.extract_strided_slice %265 {offsets = [4, 0], sizes = [2, 256], strides = [1, 1]} : vector<16x256xf32> to vector<2x256xf32>
    %313 = vector.extract_strided_slice %265 {offsets = [10, 0], sizes = [2, 256], strides = [1, 1]} : vector<16x256xf32> to vector<2x256xf32>
    %314 = arith.select %28, %312, %313 : vector<2x256xi1>, vector<2x256xf32>
    %315 = arith.truncf %311 : vector<2x64xf32> to vector<2x64xbf16>
    %cst_67 = arith.constant dense<0.000000e+00> : vector<2x256xf32>
    %316 = tpu.matmul %315, %261, %cst_67 {dimension_numbers = #tpu.dot_dimension_numbers<[1], [0], [0], [1], [0, 0, 1, 1], [], []>} : vector<2x64xbf16>, vector<64x256xbf16>, vector<2x256xf32> -> vector<2x256xf32>
    %317 = arith.addf %314, %316 : vector<2x256xf32>
    %318 = arith.negf %317 : vector<2x256xf32>
    %319 = math.exp %318 : vector<2x256xf32>
    %cst_68 = arith.constant 1.000000e+00 : f32
    %320 = vector.broadcast %cst_68 : f32 to vector<2x256xf32>
    %321 = arith.addf %320, %319 : vector<2x256xf32>
    %322 = arith.divf %320, %321 : vector<2x256xf32>
    %323 = math.tanh %317 : vector<2x256xf32>
    %324 = arith.select %33, %323, %322 : vector<2x256xi1>, vector<2x256xf32>
    %325 = vector.extract_strided_slice %324 {offsets = [0, 0], sizes = [2, 64], strides = [1, 1]} : vector<2x256xf32> to vector<2x64xf32>
    %326 = vector.extract_strided_slice %324 {offsets = [0, 64], sizes = [2, 64], strides = [1, 1]} : vector<2x256xf32> to vector<2x64xf32>
    %327 = vector.extract_strided_slice %324 {offsets = [0, 128], sizes = [2, 64], strides = [1, 1]} : vector<2x256xf32> to vector<2x64xf32>
    %328 = vector.extract_strided_slice %324 {offsets = [0, 192], sizes = [2, 64], strides = [1, 1]} : vector<2x256xf32> to vector<2x64xf32>
    %329 = arith.mulf %326, %309 : vector<2x64xf32>
    %330 = arith.mulf %325, %327 : vector<2x64xf32>
    %331 = arith.addf %329, %330 : vector<2x64xf32>
    %332 = math.tanh %331 : vector<2x64xf32>
    %333 = arith.mulf %328, %332 : vector<2x64xf32>
    %334 = vector.extract_strided_slice %265 {offsets = [6, 0], sizes = [2, 256], strides = [1, 1]} : vector<16x256xf32> to vector<2x256xf32>
    %335 = vector.extract_strided_slice %265 {offsets = [8, 0], sizes = [2, 256], strides = [1, 1]} : vector<16x256xf32> to vector<2x256xf32>
    %336 = arith.select %28, %334, %335 : vector<2x256xi1>, vector<2x256xf32>
    %337 = arith.truncf %333 : vector<2x64xf32> to vector<2x64xbf16>
    %cst_69 = arith.constant dense<0.000000e+00> : vector<2x256xf32>
    %338 = tpu.matmul %337, %261, %cst_69 {dimension_numbers = #tpu.dot_dimension_numbers<[1], [0], [0], [1], [0, 0, 1, 1], [], []>} : vector<2x64xbf16>, vector<64x256xbf16>, vector<2x256xf32> -> vector<2x256xf32>
    %339 = arith.addf %336, %338 : vector<2x256xf32>
    %340 = arith.negf %339 : vector<2x256xf32>
    %341 = math.exp %340 : vector<2x256xf32>
    %cst_70 = arith.constant 1.000000e+00 : f32
    %342 = vector.broadcast %cst_70 : f32 to vector<2x256xf32>
    %343 = arith.addf %342, %341 : vector<2x256xf32>
    %344 = arith.divf %342, %343 : vector<2x256xf32>
    %345 = math.tanh %339 : vector<2x256xf32>
    %346 = arith.select %33, %345, %344 : vector<2x256xi1>, vector<2x256xf32>
    %347 = vector.extract_strided_slice %346 {offsets = [0, 0], sizes = [2, 64], strides = [1, 1]} : vector<2x256xf32> to vector<2x64xf32>
    %348 = vector.extract_strided_slice %346 {offsets = [0, 64], sizes = [2, 64], strides = [1, 1]} : vector<2x256xf32> to vector<2x64xf32>
    %349 = vector.extract_strided_slice %346 {offsets = [0, 128], sizes = [2, 64], strides = [1, 1]} : vector<2x256xf32> to vector<2x64xf32>
    %350 = vector.extract_strided_slice %346 {offsets = [0, 192], sizes = [2, 64], strides = [1, 1]} : vector<2x256xf32> to vector<2x64xf32>
    %351 = arith.mulf %348, %331 : vector<2x64xf32>
    %352 = arith.mulf %347, %349 : vector<2x64xf32>
    %353 = arith.addf %351, %352 : vector<2x64xf32>
    %354 = math.tanh %353 : vector<2x64xf32>
    %355 = arith.mulf %350, %354 : vector<2x64xf32>
    %356 = vector.extract_strided_slice %265 {offsets = [8, 0], sizes = [2, 256], strides = [1, 1]} : vector<16x256xf32> to vector<2x256xf32>
    %357 = vector.extract_strided_slice %265 {offsets = [6, 0], sizes = [2, 256], strides = [1, 1]} : vector<16x256xf32> to vector<2x256xf32>
    %358 = arith.select %28, %356, %357 : vector<2x256xi1>, vector<2x256xf32>
    %359 = arith.truncf %355 : vector<2x64xf32> to vector<2x64xbf16>
    %cst_71 = arith.constant dense<0.000000e+00> : vector<2x256xf32>
    %360 = tpu.matmul %359, %261, %cst_71 {dimension_numbers = #tpu.dot_dimension_numbers<[1], [0], [0], [1], [0, 0, 1, 1], [], []>} : vector<2x64xbf16>, vector<64x256xbf16>, vector<2x256xf32> -> vector<2x256xf32>
    %361 = arith.addf %358, %360 : vector<2x256xf32>
    %362 = arith.negf %361 : vector<2x256xf32>
    %363 = math.exp %362 : vector<2x256xf32>
    %cst_72 = arith.constant 1.000000e+00 : f32
    %364 = vector.broadcast %cst_72 : f32 to vector<2x256xf32>
    %365 = arith.addf %364, %363 : vector<2x256xf32>
    %366 = arith.divf %364, %365 : vector<2x256xf32>
    %367 = math.tanh %361 : vector<2x256xf32>
    %368 = arith.select %33, %367, %366 : vector<2x256xi1>, vector<2x256xf32>
    %369 = vector.extract_strided_slice %368 {offsets = [0, 0], sizes = [2, 64], strides = [1, 1]} : vector<2x256xf32> to vector<2x64xf32>
    %370 = vector.extract_strided_slice %368 {offsets = [0, 64], sizes = [2, 64], strides = [1, 1]} : vector<2x256xf32> to vector<2x64xf32>
    %371 = vector.extract_strided_slice %368 {offsets = [0, 128], sizes = [2, 64], strides = [1, 1]} : vector<2x256xf32> to vector<2x64xf32>
    %372 = vector.extract_strided_slice %368 {offsets = [0, 192], sizes = [2, 64], strides = [1, 1]} : vector<2x256xf32> to vector<2x64xf32>
    %373 = arith.mulf %370, %353 : vector<2x64xf32>
    %374 = arith.mulf %369, %371 : vector<2x64xf32>
    %375 = arith.addf %373, %374 : vector<2x64xf32>
    %376 = math.tanh %375 : vector<2x64xf32>
    %377 = arith.mulf %372, %376 : vector<2x64xf32>
    %378 = vector.extract_strided_slice %265 {offsets = [10, 0], sizes = [2, 256], strides = [1, 1]} : vector<16x256xf32> to vector<2x256xf32>
    %379 = vector.extract_strided_slice %265 {offsets = [4, 0], sizes = [2, 256], strides = [1, 1]} : vector<16x256xf32> to vector<2x256xf32>
    %380 = arith.select %28, %378, %379 : vector<2x256xi1>, vector<2x256xf32>
    %381 = arith.truncf %377 : vector<2x64xf32> to vector<2x64xbf16>
    %cst_73 = arith.constant dense<0.000000e+00> : vector<2x256xf32>
    %382 = tpu.matmul %381, %261, %cst_73 {dimension_numbers = #tpu.dot_dimension_numbers<[1], [0], [0], [1], [0, 0, 1, 1], [], []>} : vector<2x64xbf16>, vector<64x256xbf16>, vector<2x256xf32> -> vector<2x256xf32>
    %383 = arith.addf %380, %382 : vector<2x256xf32>
    %384 = arith.negf %383 : vector<2x256xf32>
    %385 = math.exp %384 : vector<2x256xf32>
    %cst_74 = arith.constant 1.000000e+00 : f32
    %386 = vector.broadcast %cst_74 : f32 to vector<2x256xf32>
    %387 = arith.addf %386, %385 : vector<2x256xf32>
    %388 = arith.divf %386, %387 : vector<2x256xf32>
    %389 = math.tanh %383 : vector<2x256xf32>
    %390 = arith.select %33, %389, %388 : vector<2x256xi1>, vector<2x256xf32>
    %391 = vector.extract_strided_slice %390 {offsets = [0, 0], sizes = [2, 64], strides = [1, 1]} : vector<2x256xf32> to vector<2x64xf32>
    %392 = vector.extract_strided_slice %390 {offsets = [0, 64], sizes = [2, 64], strides = [1, 1]} : vector<2x256xf32> to vector<2x64xf32>
    %393 = vector.extract_strided_slice %390 {offsets = [0, 128], sizes = [2, 64], strides = [1, 1]} : vector<2x256xf32> to vector<2x64xf32>
    %394 = vector.extract_strided_slice %390 {offsets = [0, 192], sizes = [2, 64], strides = [1, 1]} : vector<2x256xf32> to vector<2x64xf32>
    %395 = arith.mulf %392, %375 : vector<2x64xf32>
    %396 = arith.mulf %391, %393 : vector<2x64xf32>
    %397 = arith.addf %395, %396 : vector<2x64xf32>
    %398 = math.tanh %397 : vector<2x64xf32>
    %399 = arith.mulf %394, %398 : vector<2x64xf32>
    %400 = vector.extract_strided_slice %265 {offsets = [12, 0], sizes = [2, 256], strides = [1, 1]} : vector<16x256xf32> to vector<2x256xf32>
    %401 = vector.extract_strided_slice %265 {offsets = [2, 0], sizes = [2, 256], strides = [1, 1]} : vector<16x256xf32> to vector<2x256xf32>
    %402 = arith.select %28, %400, %401 : vector<2x256xi1>, vector<2x256xf32>
    %403 = arith.truncf %399 : vector<2x64xf32> to vector<2x64xbf16>
    %cst_75 = arith.constant dense<0.000000e+00> : vector<2x256xf32>
    %404 = tpu.matmul %403, %261, %cst_75 {dimension_numbers = #tpu.dot_dimension_numbers<[1], [0], [0], [1], [0, 0, 1, 1], [], []>} : vector<2x64xbf16>, vector<64x256xbf16>, vector<2x256xf32> -> vector<2x256xf32>
    %405 = arith.addf %402, %404 : vector<2x256xf32>
    %406 = arith.negf %405 : vector<2x256xf32>
    %407 = math.exp %406 : vector<2x256xf32>
    %cst_76 = arith.constant 1.000000e+00 : f32
    %408 = vector.broadcast %cst_76 : f32 to vector<2x256xf32>
    %409 = arith.addf %408, %407 : vector<2x256xf32>
    %410 = arith.divf %408, %409 : vector<2x256xf32>
    %411 = math.tanh %405 : vector<2x256xf32>
    %412 = arith.select %33, %411, %410 : vector<2x256xi1>, vector<2x256xf32>
    %413 = vector.extract_strided_slice %412 {offsets = [0, 0], sizes = [2, 64], strides = [1, 1]} : vector<2x256xf32> to vector<2x64xf32>
    %414 = vector.extract_strided_slice %412 {offsets = [0, 64], sizes = [2, 64], strides = [1, 1]} : vector<2x256xf32> to vector<2x64xf32>
    %415 = vector.extract_strided_slice %412 {offsets = [0, 128], sizes = [2, 64], strides = [1, 1]} : vector<2x256xf32> to vector<2x64xf32>
    %416 = vector.extract_strided_slice %412 {offsets = [0, 192], sizes = [2, 64], strides = [1, 1]} : vector<2x256xf32> to vector<2x64xf32>
    %417 = arith.mulf %414, %397 : vector<2x64xf32>
    %418 = arith.mulf %413, %415 : vector<2x64xf32>
    %419 = arith.addf %417, %418 : vector<2x64xf32>
    %420 = math.tanh %419 : vector<2x64xf32>
    %421 = arith.mulf %416, %420 : vector<2x64xf32>
    %422 = vector.extract_strided_slice %265 {offsets = [14, 0], sizes = [2, 256], strides = [1, 1]} : vector<16x256xf32> to vector<2x256xf32>
    %423 = vector.extract_strided_slice %265 {offsets = [0, 0], sizes = [2, 256], strides = [1, 1]} : vector<16x256xf32> to vector<2x256xf32>
    %424 = arith.select %28, %422, %423 : vector<2x256xi1>, vector<2x256xf32>
    %425 = arith.truncf %421 : vector<2x64xf32> to vector<2x64xbf16>
    %cst_77 = arith.constant dense<0.000000e+00> : vector<2x256xf32>
    %426 = tpu.matmul %425, %261, %cst_77 {dimension_numbers = #tpu.dot_dimension_numbers<[1], [0], [0], [1], [0, 0, 1, 1], [], []>} : vector<2x64xbf16>, vector<64x256xbf16>, vector<2x256xf32> -> vector<2x256xf32>
    %427 = arith.addf %424, %426 : vector<2x256xf32>
    %428 = arith.negf %427 : vector<2x256xf32>
    %429 = math.exp %428 : vector<2x256xf32>
    %cst_78 = arith.constant 1.000000e+00 : f32
    %430 = vector.broadcast %cst_78 : f32 to vector<2x256xf32>
    %431 = arith.addf %430, %429 : vector<2x256xf32>
    %432 = arith.divf %430, %431 : vector<2x256xf32>
    %433 = math.tanh %427 : vector<2x256xf32>
    %434 = arith.select %33, %433, %432 : vector<2x256xi1>, vector<2x256xf32>
    %435 = vector.extract_strided_slice %434 {offsets = [0, 0], sizes = [2, 64], strides = [1, 1]} : vector<2x256xf32> to vector<2x64xf32>
    %436 = vector.extract_strided_slice %434 {offsets = [0, 64], sizes = [2, 64], strides = [1, 1]} : vector<2x256xf32> to vector<2x64xf32>
    %437 = vector.extract_strided_slice %434 {offsets = [0, 128], sizes = [2, 64], strides = [1, 1]} : vector<2x256xf32> to vector<2x64xf32>
    %438 = vector.extract_strided_slice %434 {offsets = [0, 192], sizes = [2, 64], strides = [1, 1]} : vector<2x256xf32> to vector<2x64xf32>
    %439 = arith.mulf %436, %419 : vector<2x64xf32>
    %440 = arith.mulf %435, %437 : vector<2x64xf32>
    %441 = arith.addf %439, %440 : vector<2x64xf32>
    %442 = math.tanh %441 : vector<2x64xf32>
    %443 = arith.mulf %438, %442 : vector<2x64xf32>
    %444 = arith.select %36, %443, %289 : vector<2x64xi1>, vector<2x64xf32>
    %c0_79 = arith.constant 0 : index
    %c0_80 = arith.constant 0 : index
    %445 = vector.load %arg3[%c0_79, %c0_80] : memref<208x128xf32, #tpu.memory_space<vmem>>, vector<64x128xf32>
    %446 = arith.truncf %444 : vector<2x64xf32> to vector<2x64xbf16>
    %447 = arith.truncf %445 : vector<64x128xf32> to vector<64x128xbf16>
    %cst_81 = arith.constant dense<0.000000e+00> : vector<2x128xf32>
    %448 = tpu.matmul %446, %447, %cst_81 {dimension_numbers = #tpu.dot_dimension_numbers<[1], [0], [0], [1], [0, 0, 1, 1], [], []>} : vector<2x64xbf16>, vector<64x128xbf16>, vector<2x128xf32> -> vector<2x128xf32>
    %c64 = arith.constant 64 : index
    %c0_82 = arith.constant 0 : index
    %449 = vector.load %arg3[%c64, %c0_82] : memref<208x128xf32, #tpu.memory_space<vmem>>, vector<1x128xf32>
    %450 = vector.broadcast %449 : vector<1x128xf32> to vector<2x128xf32>
    %451 = arith.addf %448, %450 : vector<2x128xf32>
    %c72 = arith.constant 72 : index
    %c0_83 = arith.constant 0 : index
    %452 = vector.load %arg3[%c72, %c0_83] : memref<208x128xf32, #tpu.memory_space<vmem>>, vector<128x128xf32>
    %453 = arith.truncf %451 : vector<2x128xf32> to vector<2x128xbf16>
    %454 = arith.truncf %452 : vector<128x128xf32> to vector<128x128xbf16>
    %cst_84 = arith.constant dense<0.000000e+00> : vector<2x128xf32>
    %455 = tpu.matmul %453, %454, %cst_84 {dimension_numbers = #tpu.dot_dimension_numbers<[1], [0], [0], [1], [0, 0, 1, 1], [], []>} : vector<2x128xbf16>, vector<128x128xbf16>, vector<2x128xf32> -> vector<2x128xf32>
    %c200 = arith.constant 200 : index
    %c0_85 = arith.constant 0 : index
    %456 = vector.load %arg3[%c200, %c0_85] : memref<208x128xf32, #tpu.memory_space<vmem>>, vector<1x128xf32>
    %457 = vector.broadcast %456 : vector<1x128xf32> to vector<2x128xf32>
    %458 = arith.addf %455, %457 : vector<2x128xf32>
    %c0_86 = arith.constant 0 : index
    %c0_87 = arith.constant 0 : index
    %459 = vector.load %arg4[%c0_86, %c0_87] : memref<2x128xf32, #tpu.memory_space<vmem>>, vector<2x128xf32>
    tpu.vector_store %arg4[%c0_86, %c0_87], %458 {strides = array<i32>} : memref<2x128xf32, #tpu.memory_space<vmem>>, vector<2x128xf32>,
    return
  }
}

</mosaic_0001>

<llo_original>
// kernel: lstm_forward.1
$region0: #{lstm_forward.1}
  #allocation0 [shape = 'u32[]', space=smem, size = 0x4, offset = 0x4, fixed_abs, tag = 'smem constant byte address 0x4 - core index']
  #allocation1 [shape = 'u32[72,128]{1,0:T(1,128)}', space=vmem, size = 0x9000, scoped, tag = 'internal scratch']
  #allocation2 [shape = 'f32[16,64]{1,0:T(8,128)}', space=vmem, size = 0x2000, scoped, tag = 'scratch operand']
  %s0 = inlined_call_operand.vmem [shape: s32[16,1], index: 0, kind: input, shape index: {}]
  %s1 = inlined_call_operand.vmem [shape: f32[128,32], index: 1, kind: input, shape index: {}]
  %s2 = inlined_call_operand.hbm [shape: f32[240,256], index: 2, kind: input, shape index: {}]
  %s3 = inlined_call_operand.hbm [shape: f32[208,128], index: 3, kind: input, shape index: {}]
  %s4 = inlined_call_operand.hbm [shape: f32[2,128], index: 4, kind: output, shape index: {}]
  %s5 = sld [smem:[#allocation0]]
  $region34: #{lstm_forward.1} parent=0
    _
  %s7 = ssub.s32 1, %s5
  %s8 = scalar_select 0, %s7, %s5
  $region1: #{lstm_forward.1} parent=0
    #allocation3 [shape = 'u8[245760]{0}', space=vmem, size = 0x3c000, scoped, tag = 'input window, operand 2, single buffered']
    #allocation4 [shape = 's32[1]{0}', space=sflag, size = 0x4, scoped, tag = 'scoped memory for lstm_forward.1']
    #allocation5 [shape = 's32[1]{0}', space=sflag, size = 0x4, scoped, tag = 'scoped memory for lstm_forward.1']
    #allocation6 [shape = 'u8[106496]{0}', space=vmem, size = 0x1a000, scoped, tag = 'input window, operand 3, single buffered']
    #allocation7 [shape = 's32[1]{0}', space=sflag, size = 0x4, scoped, tag = 'scoped memory for lstm_forward.1']
    #allocation8 [shape = 'u8[1024]{0}', space=vmem, size = 0x400, scoped, tag = 'output window, operand 0, single buffered']
    %9 = vsyncpa [#allocation4], 0
    %10 = vsyncpa [#allocation7], 0
    %11 = vsyncpa [#allocation5], 0
    // Predicated region
    $region2: #{lstm_forward.1} parent=1 // pred_check
      _
    $region3: #{lstm_forward.1} parent=1 // pred_check_branch
      %13 = sbr.rel (0) target = $region5
    $region4: #{lstm_forward.1} parent=1 // pred_region
      _
    $region5: #{lstm_forward.1} parent=1 // pred_fallthru
      _
    // Predicated region
    $region6: #{lstm_forward.1} parent=1 // pred_check
      _
    $region7: #{lstm_forward.1} parent=1 // pred_check_branch
      %15 = sbr.rel (0) target = $region9
    $region8: #{lstm_forward.1} parent=1 // pred_region
      _
    $region9: #{lstm_forward.1} parent=1 // pred_fallthru
      _
    // Predicated region
    $region10: #{lstm_forward.1} parent=1 // pred_check
      _
    $region11: #{lstm_forward.1} parent=1 // pred_check_branch
      %17 = sbr.rel (0) target = $region13
    $region12: #{lstm_forward.1} parent=1 // pred_region
      %19 = vsyncadd [#allocation4], 0
      %s20 = sshll.u32 %s2, 4
      %s21 = int_to_ptr.hbm [resolvable:$true] %s20
      %s22 = sshll.u32 [#allocation3], 4
      %s23 = int_to_ptr.vmem [resolvable:$true] %s22
      %28 = dma.hbm_to_vmem [thread:$0]  %s21, 7680, %s23, [#allocation4], 256, 256, 16
    $region13: #{lstm_forward.1} parent=1 // pred_fallthru
      _
    // Predicated region
    $region14: #{lstm_forward.1} parent=1 // pred_check
      _
    $region15: #{lstm_forward.1} parent=1 // pred_check_branch
      %30 = sbr.rel (0) target = $region17
    $region16: #{lstm_forward.1} parent=1 // pred_region
      %32 = vsyncadd [#allocation7], 0
      %s33 = sshll.u32 %s3, 4
      %s34 = int_to_ptr.hbm [resolvable:$true] %s33
      %s35 = sshll.u32 [#allocation6], 4
      %s36 = int_to_ptr.vmem [resolvable:$true] %s35
      %41 = dma.hbm_to_vmem [thread:$0]  %s34, 3328, %s36, [#allocation7], 128, 128, 8
    $region17: #{lstm_forward.1} parent=1 // pred_fallthru
      _
    // Predicated region
    $region18: #{lstm_forward.1} parent=1 // pred_check
      _
    $region19: #{lstm_forward.1} parent=1 // pred_check_branch
      %43 = sbr.rel (0) target = $region21
    $region20: #{lstm_forward.1} parent=1 // pred_region
      %45 = dma.done [#allocation4], 7680
    $region21: #{lstm_forward.1} parent=1 // pred_fallthru
      _
    // Predicated region
    $region22: #{lstm_forward.1} parent=1 // pred_check
      _
    $region23: #{lstm_forward.1} parent=1 // pred_check_branch
      %47 = sbr.rel (0) target = $region25
    $region24: #{lstm_forward.1} parent=1 // pred_region
      %49 = dma.done [#allocation7], 3328
    $region25: #{lstm_forward.1} parent=1 // pred_fallthru
      _
    %v51 = vld [vmem:[%s0] sm:$0xff]
    %v52 = vld [vmem:[%s0 + $0x8] sm:$0xff]
    %v53 = vlaneseq
    %v54 = vand.u32 %v53, 127
    %55 = vset.pattern.permute.xlu0 0
    %56 = vperm.xlu0 %55, %v51
    %v57 = vpop.permute.xlu0 %56
    %58 = vset.pattern.permute.xlu0 0
    %59 = vperm.xlu0 %58, %v52
    %v60 = vpop.permute.xlu0 %59
    %vm61 = vcmp.eq.s32.totalorder %v57, %v54
    %vm62 = vcmp.eq.s32.totalorder %v60, %v54
    %v63 = vld [vmem:[%s1] sm:$0xff]
    %v64 = vld [vmem:[%s1 + $0x8] sm:$0xff]
    %v65 = vld [vmem:[%s1 + $0x10] sm:$0xff]
    %v66 = vld [vmem:[%s1 + $0x18] sm:$0xff]
    %v67 = vld [vmem:[%s1 + $0x20] sm:$0xff]
    %v68 = vld [vmem:[%s1 + $0x28] sm:$0xff]
    %v69 = vld [vmem:[%s1 + $0x30] sm:$0xff]
    %v70 = vld [vmem:[%s1 + $0x38] sm:$0xff]
    %v71 = vld [vmem:[%s1 + $0x40] sm:$0xff]
    %v72 = vld [vmem:[%s1 + $0x48] sm:$0xff]
    %v73 = vld [vmem:[%s1 + $0x50] sm:$0xff]
    %v74 = vld [vmem:[%s1 + $0x58] sm:$0xff]
    %v75 = vld [vmem:[%s1 + $0x60] sm:$0xff]
    %v76 = vld [vmem:[%s1 + $0x68] sm:$0xff]
    %v77 = vld [vmem:[%s1 + $0x70] sm:$0xff]
    %v78 = vld [vmem:[%s1 + $0x78] sm:$0xff]
    %v79 = vsel %vm61, 1, 0
    %v80 = vsel %vm62, 1, 0
    %v81 = vcvt.s32.f32 %v79
    %v82 = vcvt.s32.f32 %v80
    %v83 = vpack.c.bf16 %v82, %v81
    %v84 = vpack.c.bf16 %v64, %v63
    %v85 = vpack.c.bf16 %v66, %v65
    %v86 = vpack.c.bf16 %v68, %v67
    %v87 = vpack.c.bf16 %v70, %v69
    %v88 = vpack.c.bf16 %v72, %v71
    %v89 = vpack.c.bf16 %v74, %v73
    %v90 = vpack.c.bf16 %v76, %v75
    %v91 = vpack.c.bf16 %v78, %v77
    %92 = vmatpush.bf16.msra.mxu0 %v91
    %93 = vmatpush.bf16.msra.mxu0 %v90
    %94 = vmatpush.bf16.msra.mxu0 %v89
    %95 = vmatpush.bf16.msra.mxu0 %v88
    %96 = vmatpush.bf16.msra.mxu0 %v87
    %97 = vmatpush.bf16.msra.mxu0 %v86
    %98 = vmatpush.bf16.msra.mxu0 %v85
    %99 = vmatpush.bf16.msra.mxu0 %v84
    %100 = vmatmul.bf16.gmra.mxu0 %v83
    %v101 = vpop.f32.mrf.mxu0
    %v102 = vadd.f32 0.0, %v101
    %v103 = vpop.f32.mrf.mxu0
    %v104 = vadd.f32 0.0, %v103
    %105 = vdwg.mxu0
    %v106 = vadd.s32 %v54, 128
    %vm107 = vcmp.lt.s32.totalorder %v54, 0
    %v108 = vsub.s32 0, %v54
    %v109 = vsel %vm107, %v108, %v54
    %v110 = vshrl.u32 %v109, 6
    %v111 = vand.u32 %v109, 63
    %v112 = vsub.s32 0, %v111
    %v113 = vsel %vm107, %v112, %v111
    %vm114 = vcmp.lt.s32.totalorder %v106, 0
    %v115 = vsub.s32 0, %v106
    %v116 = vsel %vm114, %v115, %v106
    %v117 = vshrl.u32 %v116, 6
    %v118 = vand.u32 %v116, 63
    %v119 = vsub.s32 0, %v118
    %v120 = vsel %vm114, %v119, %v118
    %vm121 = vcmp.ne.s32.totalorder %v113, 0
    %vm122 = vcmp.ne.s32.totalorder %v120, 0
    %vm123 = vcmp.lt.s32.totalorder %v113, 0
    %vm124 = vcmp.lt.s32.totalorder %v120, 0
    %vm125 = vmand %vm123, %vm121
    %vm126 = vmand %vm124, %vm122
    %v127 = vadd.s32 %v113, 64
    %v128 = vadd.s32 %v120, 64
    %v129 = vsel %vm125, %v127, %v113
    %v130 = vsel %vm126, %v128, %v120
    %vm131 = vcmp.lt.s32.totalorder %v129, 32
    %vm132 = vcmp.lt.s32.totalorder %v130, 32
    %vm133 = vcmp.ge.s32.totalorder %v54, 128
    %vm134 = vcmp.ge.s32.totalorder %v106, 128
    %vm135 = vcmp.lt.s32.totalorder %v54, 192
    %vm136 = vcmp.lt.s32.totalorder %v106, 192
    %vm137 = vmand %vm133, %vm135
    %vm138 = vmand %vm134, %vm136
    %vm139 = vcmp.lt.s32.totalorder %v54, 32
    %v140 = vld [vmem:[#allocation3] sm:$0xff]
    %v141 = vld [vmem:[#allocation3 + $0x8] sm:$0xff]
    %v142 = vld [vmem:[#allocation3 + $0x10] sm:$0xff]
    %v143 = vld [vmem:[#allocation3 + $0x18] sm:$0xff]
    %v144 = vld [vmem:[#allocation3 + $0x20] sm:$0xff]
    %v145 = vld [vmem:[#allocation3 + $0x28] sm:$0xff]
    %v146 = vld [vmem:[#allocation3 + $0x30] sm:$0xff]
    %v147 = vld [vmem:[#allocation3 + $0x38] sm:$0xff]
    %v148 = vld [vmem:[#allocation3 + $0x40] sm:$0xff]
    %v149 = vld [vmem:[#allocation3 + $0x48] sm:$0xff]
    %v150 = vld [vmem:[#allocation3 + $0x50] sm:$0xff]
    %v151 = vld [vmem:[#allocation3 + $0x58] sm:$0xff]
    %v152 = vld [vmem:[#allocation3 + $0x60] sm:$0xff]
    %v153 = vld [vmem:[#allocation3 + $0x68] sm:$0xff]
    %v154 = vld [vmem:[#allocation3 + $0x70] sm:$0xff]
    %v155 = vld [vmem:[#allocation3 + $0x78] sm:$0xff]
    %v156 = vld [vmem:[#allocation3 + $0x80] sm:$0xff]
    %v157 = vld [vmem:[#allocation3 + $0x88] sm:$0xff]
    %v158 = vld [vmem:[#allocation3 + $0x90] sm:$0xff]
    %v159 = vld [vmem:[#allocation3 + $0x98] sm:$0xff]
    %v160 = vld [vmem:[#allocation3 + $0xa0] sm:$0xff]
    %v161 = vld [vmem:[#allocation3 + $0xa8] sm:$0xff]
    %v162 = vld [vmem:[#allocation3 + $0xb0] sm:$0xff]
    %v163 = vld [vmem:[#allocation3 + $0xb8] sm:$0xff]
    %s164 = scalar_lea.vmem [#allocation3], 192
    %v165 = vld [vmem:[%s164] ss:$8 sm:$0x3]
    %v166 = vpack.c.bf16 %v142, %v140
    %v167 = vpack.c.bf16 %v143, %v141
    %v168 = vpack.c.bf16 %v146, %v144
    %v169 = vpack.c.bf16 %v147, %v145
    %v170 = vpack.c.bf16 %v150, %v148
    %v171 = vpack.c.bf16 %v151, %v149
    %v172 = vpack.c.bf16 %v154, %v152
    %v173 = vpack.c.bf16 %v155, %v153
    %v174 = vpack.c.bf16 %v158, %v156
    %v175 = vpack.c.bf16 %v159, %v157
    %v176 = vpack.c.bf16 %v162, %v160
    %v177 = vpack.c.bf16 %v163, %v161
    %v178 = vpack.c.bf16 %v104, %v102
    %v180 = vperm.slane %v165, 0
    %v181 = vperm.slane %v165, 1
    %vm184 = vcmask 261120
    %v186 = vsel %vm184, %v178, 0
    %188 = vmatpush.bf16.msra.mxu0 0
    %189 = vmatpush.bf16.msra.mxu0 0
    %190 = vmatpush.bf16.msra.mxu0 0
    %191 = vmatpush.bf16.msra.mxu0 0
    %192 = vmatpush.bf16.msra.mxu0 0
    %193 = vmatpush.bf16.msra.mxu0 0
    %194 = vmatpush.bf16.msra.mxu0 %v168
    %195 = vmatpush.bf16.msra.mxu0 %v166
    %196 = vmatmul.bf16.gmra.mxu0 %v186
    %v197 = vpop.f32.mrf.mxu0
    %v198 = vadd.f32 %v180, %v197
    %v199 = vpop.f32.mrf.mxu0
    %v200 = vadd.f32 %v180, %v199
    %201 = vdwg.mxu0
    %202 = vmatpush.bf16.msra.mxu0 0
    %203 = vmatpush.bf16.msra.mxu0 0
    %204 = vmatpush.bf16.msra.mxu0 0
    %205 = vmatpush.bf16.msra.mxu0 0
    %206 = vmatpush.bf16.msra.mxu0 0
    %207 = vmatpush.bf16.msra.mxu0 0
    %208 = vmatpush.bf16.msra.mxu0 %v169
    %209 = vmatpush.bf16.msra.mxu0 %v167
    %210 = vmatmul.bf16.gmra.mxu0 %v186
    %v211 = vpop.f32.mrf.mxu0
    %v212 = vadd.f32 %v181, %v211
    %v213 = vpop.f32.mrf.mxu0
    %v214 = vadd.f32 %v181, %v213
    %215 = vdwg.mxu0
    %v218 = vrot.slane %v200, 6
    %v219 = vrot.slane %v214, 6
    %v222 = vsel %vm131, %v198, %v218
    %v223 = vsel %vm132, %v212, %v219
    %vm224 = vcmask 523264
    %v226 = vsel %vm224, 0, 0
    %228 = vmatpush.bf16.msra.mxu0 0
    %229 = vmatpush.bf16.msra.mxu0 0
    %230 = vmatpush.bf16.msra.mxu0 0
    %231 = vmatpush.bf16.msra.mxu0 0
    %232 = vmatpush.bf16.msra.mxu0 %v176
    %233 = vmatpush.bf16.msra.mxu0 %v174
    %234 = vmatpush.bf16.msra.mxu0 %v172
    %235 = vmatpush.bf16.msra.mxu0 %v170
    %236 = vmatmul.bf16.gmra.mxu0 %v226
    %v237 = vpop.f32.mrf.mxu0
    %v238 = vadd.f32 0.0, %v237
    %v239 = vpop.f32.mrf.mxu0
    %240 = vdwg.mxu0
    %241 = vmatpush.bf16.msra.mxu0 0
    %242 = vmatpush.bf16.msra.mxu0 0
    %243 = vmatpush.bf16.msra.mxu0 0
    %244 = vmatpush.bf16.msra.mxu0 0
    %245 = vmatpush.bf16.msra.mxu0 %v177
    %246 = vmatpush.bf16.msra.mxu0 %v175
    %247 = vmatpush.bf16.msra.mxu0 %v173
    %248 = vmatpush.bf16.msra.mxu0 %v171
    %249 = vmatmul.bf16.gmra.mxu0 %v226
    %v250 = vpop.f32.mrf.mxu0
    %v251 = vadd.f32 0.0, %v250
    %v252 = vpop.f32.mrf.mxu0
    %253 = vdwg.mxu0
    %v254 = vadd.f32 %v222, %v238
    %v255 = vadd.f32 %v223, %v251
    %v256 = vxor.u32 %v254, 2147483648
    %v257 = vxor.u32 %v255, 2147483648
    %v258 = vmul.f32 %v256, 1.442695
    %v259 = vpow.pop %v258
    %v260 = vmul.f32 %v257, 1.442695
    %v261 = vpow.pop %v260
    %v262 = vadd.f32 %v259, 1.0
    %v263 = vadd.f32 %v261, 1.0
    %v264 = vrcp.pop %v262
    %v265 = vmul.f32 %v262, %v264
    %v266 = vsub.f32 1.0, %v265
    %v267 = vmul.f32 %v264, %v266
    %v268 = vadd.f32 %v264, %v267
    %vm269 = vweird.f32 %v262
    %vm270 = vweird.f32 %v264
    %vm271 = vmor %vm269, %vm270
    %v272 = vsel %vm271, %v264, %v268
    %v273 = vand.u32 2147483647, %v262
    %vm274 = vcmp.eq.f32.partialorder %v273, 8.507059e+37
    %v275 = vand.u32 %v262, 2147483648
    %v276 = vor.u32 1.1754944e-38, %v275
    %v277 = vsel %vm274, %v276, %v272
    %v278 = vmul.f32 1.0, %v277
    %v279 = vrcp.pop %v263
    %v280 = vmul.f32 %v263, %v279
    %v281 = vsub.f32 1.0, %v280
    %v282 = vmul.f32 %v279, %v281
    %v283 = vadd.f32 %v279, %v282
    %vm284 = vweird.f32 %v263
    %vm285 = vweird.f32 %v279
    %vm286 = vmor %vm284, %vm285
    %v287 = vsel %vm286, %v279, %v283
    %v288 = vand.u32 2147483647, %v263
    %vm289 = vcmp.eq.f32.partialorder %v288, 8.507059e+37
    %v290 = vand.u32 %v263, 2147483648
    %v291 = vor.u32 1.1754944e-38, %v290
    %v292 = vsel %vm289, %v291, %v287
    %v293 = vmul.f32 1.0, %v292
    %v294 = vtanh.pop %v254
    %v295 = vtanh.pop %v255
    %v296 = vsel %vm137, %v294, %v278
    %v297 = vsel %vm138, %v295, %v293
    %v298 = vmul.f32 %v296, 0.0
    %v299 = vmul.f32 %v296, %v297
    %301 = vrot.lane.b32.xlu0 %v299, 64
    %v302 = vpop.permute.xlu0 %301
    %v304 = vadd.f32 %v298, %v302
    %v305 = vtanh.pop %v304
    %v306 = vmul.f32 %v297, %v305
    %308 = vrot.lane.b32.xlu0 %v306, 64
    %v309 = vpop.permute.xlu0 %308
    %vm311 = vcmask 254976
    %312 = vst.msk [vmem:[#allocation2] sm:$0x3] %vm311, %v309
    %vm313 = vcmask 517376
    %314 = vst.msk [vmem:[#allocation2 + $0xe] sm:$0x3] %vm313, %v309
    %v315 = vrot.slane %v200, 2
    %v316 = vrot.slane %v214, 2
    %v319 = vsel %vm131, %v198, %v315
    %v320 = vsel %vm132, %v212, %v316
    %v321 = vpack.c.bf16 %v306, %v306
    %323 = vrot.lane.b32.xlu0 %v321, 64
    %v324 = vpop.permute.xlu0 %323
    %v326 = vsel %vm224, %v324, 0
    %328 = vmatpush.bf16.msra.mxu0 0
    %329 = vmatpush.bf16.msra.mxu0 0
    %330 = vmatpush.bf16.msra.mxu0 0
    %331 = vmatpush.bf16.msra.mxu0 0
    %332 = vmatpush.bf16.msra.mxu0 %v176
    %333 = vmatpush.bf16.msra.mxu0 %v174
    %334 = vmatpush.bf16.msra.mxu0 %v172
    %335 = vmatpush.bf16.msra.mxu0 %v170
    %336 = vmatmul.bf16.gmra.mxu0 %v326
    %v337 = vpop.f32.mrf.mxu0
    %v338 = vadd.f32 0.0, %v337
    %v339 = vpop.f32.mrf.mxu0
    %340 = vdwg.mxu0
    %341 = vmatpush.bf16.msra.mxu0 0
    %342 = vmatpush.bf16.msra.mxu0 0
    %343 = vmatpush.bf16.msra.mxu0 0
    %344 = vmatpush.bf16.msra.mxu0 0
    %345 = vmatpush.bf16.msra.mxu0 %v177
    %346 = vmatpush.bf16.msra.mxu0 %v175
    %347 = vmatpush.bf16.msra.mxu0 %v173
    %348 = vmatpush.bf16.msra.mxu0 %v171
    %349 = vmatmul.bf16.gmra.mxu0 %v326
    %v350 = vpop.f32.mrf.mxu0
    %v351 = vadd.f32 0.0, %v350
    %v352 = vpop.f32.mrf.mxu0
    %353 = vdwg.mxu0
    %v356 = vrot.slane %v338, 6
    %v357 = vrot.slane %v351, 6
    %v360 = vadd.f32 %v319, %v356
    %v361 = vadd.f32 %v320, %v357
    %v362 = vxor.u32 %v360, 2147483648
    %v363 = vxor.u32 %v361, 2147483648
    %v364 = vmul.f32 %v362, 1.442695
    %v365 = vpow.pop %v364
    %v366 = vmul.f32 %v363, 1.442695
    %v367 = vpow.pop %v366
    %v368 = vadd.f32 %v365, 1.0
    %v369 = vadd.f32 %v367, 1.0
    %v370 = vrcp.pop %v368
    %v371 = vmul.f32 %v368, %v370
    %v372 = vsub.f32 1.0, %v371
    %v373 = vmul.f32 %v370, %v372
    %v374 = vadd.f32 %v370, %v373
    %vm375 = vweird.f32 %v368
    %vm376 = vweird.f32 %v370
    %vm377 = vmor %vm375, %vm376
    %v378 = vsel %vm377, %v370, %v374
    %v379 = vand.u32 2147483647, %v368
    %vm380 = vcmp.eq.f32.partialorder %v379, 8.507059e+37
    %v381 = vand.u32 %v368, 2147483648
    %v382 = vor.u32 1.1754944e-38, %v381
    %v383 = vsel %vm380, %v382, %v378
    %v384 = vmul.f32 1.0, %v383
    %v385 = vrcp.pop %v369
    %v386 = vmul.f32 %v369, %v385
    %v387 = vsub.f32 1.0, %v386
    %v388 = vmul.f32 %v385, %v387
    %v389 = vadd.f32 %v385, %v388
    %vm390 = vweird.f32 %v369
    %vm391 = vweird.f32 %v385
    %vm392 = vmor %vm390, %vm391
    %v393 = vsel %vm392, %v385, %v389
    %v394 = vand.u32 2147483647, %v369
    %vm395 = vcmp.eq.f32.partialorder %v394, 8.507059e+37
    %v396 = vand.u32 %v369, 2147483648
    %v397 = vor.u32 1.1754944e-38, %v396
    %v398 = vsel %vm395, %v397, %v393
    %v399 = vmul.f32 1.0, %v398
    %v400 = vtanh.pop %v360
    %v401 = vtanh.pop %v361
    %v402 = vsel %vm137, %v400, %v384
    %v403 = vsel %vm138, %v401, %v399
    %v405 = vrot.slane %v304, 6
    %v407 = vmul.f32 %v402, %v405
    %v408 = vmul.f32 %v402, %v403
    %410 = vrot.lane.b32.xlu0 %v408, 64
    %v411 = vpop.permute.xlu0 %410
    %v413 = vadd.f32 %v407, %v411
    %v414 = vtanh.pop %v413
    %v415 = vmul.f32 %v403, %v414
    %417 = vrot.lane.b32.xlu0 %v415, 64
    %v418 = vpop.permute.xlu0 %417
    %vm420 = vcmask 257026
    %421 = vst.msk [vmem:[#allocation2] sm:$0xc] %vm420, %v418
    %vm422 = vcmask 519426
    %423 = vst.msk [vmem:[#allocation2 + $0xa] sm:$0xc] %vm422, %v418
    %v424 = vpack.c.bf16 %v415, %v415
    %v426 = vrot.slane %v424, 1
    %427 = vrot.lane.b32.xlu0 %v426, 64
    %v428 = vpop.permute.xlu0 %427
    %v430 = vsel %vm224, %v428, 0
    %432 = vmatpush.bf16.msra.mxu0 0
    %433 = vmatpush.bf16.msra.mxu0 0
    %434 = vmatpush.bf16.msra.mxu0 0
    %435 = vmatpush.bf16.msra.mxu0 0
    %436 = vmatpush.bf16.msra.mxu0 %v176
    %437 = vmatpush.bf16.msra.mxu0 %v174
    %438 = vmatpush.bf16.msra.mxu0 %v172
    %439 = vmatpush.bf16.msra.mxu0 %v170
    %440 = vmatmul.bf16.gmra.mxu0 %v430
    %v441 = vpop.f32.mrf.mxu0
    %v442 = vadd.f32 0.0, %v441
    %v443 = vpop.f32.mrf.mxu0
    %444 = vdwg.mxu0
    %445 = vmatpush.bf16.msra.mxu0 0
    %446 = vmatpush.bf16.msra.mxu0 0
    %447 = vmatpush.bf16.msra.mxu0 0
    %448 = vmatpush.bf16.msra.mxu0 0
    %449 = vmatpush.bf16.msra.mxu0 %v177
    %450 = vmatpush.bf16.msra.mxu0 %v175
    %451 = vmatpush.bf16.msra.mxu0 %v173
    %452 = vmatpush.bf16.msra.mxu0 %v171
    %453 = vmatmul.bf16.gmra.mxu0 %v430
    %v454 = vpop.f32.mrf.mxu0
    %v455 = vadd.f32 0.0, %v454
    %v456 = vpop.f32.mrf.mxu0
    %457 = vdwg.mxu0
    %v460 = vrot.slane %v442, 4
    %v461 = vrot.slane %v455, 4
    %v464 = vadd.f32 %v222, %v460
    %v465 = vadd.f32 %v223, %v461
    %v466 = vxor.u32 %v464, 2147483648
    %v467 = vxor.u32 %v465, 2147483648
    %v468 = vmul.f32 %v466, 1.442695
    %v469 = vpow.pop %v468
    %v470 = vmul.f32 %v467, 1.442695
    %v471 = vpow.pop %v470
    %v472 = vadd.f32 %v469, 1.0
    %v473 = vadd.f32 %v471, 1.0
    %v474 = vrcp.pop %v472
    %v475 = vmul.f32 %v472, %v474
    %v476 = vsub.f32 1.0, %v475
    %v477 = vmul.f32 %v474, %v476
    %v478 = vadd.f32 %v474, %v477
    %vm479 = vweird.f32 %v472
    %vm480 = vweird.f32 %v474
    %vm481 = vmor %vm479, %vm480
    %v482 = vsel %vm481, %v474, %v478
    %v483 = vand.u32 2147483647, %v472
    %vm484 = vcmp.eq.f32.partialorder %v483, 8.507059e+37
    %v485 = vand.u32 %v472, 2147483648
    %v486 = vor.u32 1.1754944e-38, %v485
    %v487 = vsel %vm484, %v486, %v482
    %v488 = vmul.f32 1.0, %v487
    %v489 = vrcp.pop %v473
    %v490 = vmul.f32 %v473, %v489
    %v491 = vsub.f32 1.0, %v490
    %v492 = vmul.f32 %v489, %v491
    %v493 = vadd.f32 %v489, %v492
    %vm494 = vweird.f32 %v473
    %vm495 = vweird.f32 %v489
    %vm496 = vmor %vm494, %vm495
    %v497 = vsel %vm496, %v489, %v493
    %v498 = vand.u32 2147483647, %v473
    %vm499 = vcmp.eq.f32.partialorder %v498, 8.507059e+37
    %v500 = vand.u32 %v473, 2147483648
    %v501 = vor.u32 1.1754944e-38, %v500
    %v502 = vsel %vm499, %v501, %v497
    %v503 = vmul.f32 1.0, %v502
    %v504 = vtanh.pop %v464
    %v505 = vtanh.pop %v465
    %v506 = vsel %vm137, %v504, %v488
    %v507 = vsel %vm138, %v505, %v503
    %v509 = vrot.slane %v413, 6
    %v511 = vmul.f32 %v506, %v509
    %v512 = vmul.f32 %v506, %v507
    %514 = vrot.lane.b32.xlu0 %v512, 64
    %v515 = vpop.permute.xlu0 %514
    %v517 = vadd.f32 %v511, %v515
    %v518 = vtanh.pop %v517
    %v519 = vmul.f32 %v507, %v518
    %521 = vrot.lane.b32.xlu0 %v519, 64
    %v522 = vpop.permute.xlu0 %521
    %vm524 = vcmask 259076
    %525 = vst.msk [vmem:[#allocation2] sm:$0x30] %vm524, %v522
    %vm526 = vcmask 521476
    %527 = vst.msk [vmem:[#allocation2 + $0x6] sm:$0x30] %vm526, %v522
    %v528 = vpack.c.bf16 %v519, %v519
    %v530 = vrot.slane %v528, 2
    %531 = vrot.lane.b32.xlu0 %v530, 64
    %v532 = vpop.permute.xlu0 %531
    %v534 = vsel %vm224, %v532, 0
    %536 = vmatpush.bf16.msra.mxu0 0
    %537 = vmatpush.bf16.msra.mxu0 0
    %538 = vmatpush.bf16.msra.mxu0 0
    %539 = vmatpush.bf16.msra.mxu0 0
    %540 = vmatpush.bf16.msra.mxu0 %v176
    %541 = vmatpush.bf16.msra.mxu0 %v174
    %542 = vmatpush.bf16.msra.mxu0 %v172
    %543 = vmatpush.bf16.msra.mxu0 %v170
    %544 = vmatmul.bf16.gmra.mxu0 %v534
    %v545 = vpop.f32.mrf.mxu0
    %v546 = vadd.f32 0.0, %v545
    %v547 = vpop.f32.mrf.mxu0
    %548 = vdwg.mxu0
    %549 = vmatpush.bf16.msra.mxu0 0
    %550 = vmatpush.bf16.msra.mxu0 0
    %551 = vmatpush.bf16.msra.mxu0 0
    %552 = vmatpush.bf16.msra.mxu0 0
    %553 = vmatpush.bf16.msra.mxu0 %v177
    %554 = vmatpush.bf16.msra.mxu0 %v175
    %555 = vmatpush.bf16.msra.mxu0 %v173
    %556 = vmatpush.bf16.msra.mxu0 %v171
    %557 = vmatmul.bf16.gmra.mxu0 %v534
    %v558 = vpop.f32.mrf.mxu0
    %v559 = vadd.f32 0.0, %v558
    %v560 = vpop.f32.mrf.mxu0
    %561 = vdwg.mxu0
    %v564 = vrot.slane %v546, 2
    %v565 = vrot.slane %v559, 2
    %v568 = vadd.f32 %v319, %v564
    %v569 = vadd.f32 %v320, %v565
    %v570 = vxor.u32 %v568, 2147483648
    %v571 = vxor.u32 %v569, 2147483648
    %v572 = vmul.f32 %v570, 1.442695
    %v573 = vpow.pop %v572
    %v574 = vmul.f32 %v571, 1.442695
    %v575 = vpow.pop %v574
    %v576 = vadd.f32 %v573, 1.0
    %v577 = vadd.f32 %v575, 1.0
    %v578 = vrcp.pop %v576
    %v579 = vmul.f32 %v576, %v578
    %v580 = vsub.f32 1.0, %v579
    %v581 = vmul.f32 %v578, %v580
    %v582 = vadd.f32 %v578, %v581
    %vm583 = vweird.f32 %v576
    %vm584 = vweird.f32 %v578
    %vm585 = vmor %vm583, %vm584
    %v586 = vsel %vm585, %v578, %v582
    %v587 = vand.u32 2147483647, %v576
    %vm588 = vcmp.eq.f32.partialorder %v587, 8.507059e+37
    %v589 = vand.u32 %v576, 2147483648
    %v590 = vor.u32 1.1754944e-38, %v589
    %v591 = vsel %vm588, %v590, %v586
    %v592 = vmul.f32 1.0, %v591
    %v593 = vrcp.pop %v577
    %v594 = vmul.f32 %v577, %v593
    %v595 = vsub.f32 1.0, %v594
    %v596 = vmul.f32 %v593, %v595
    %v597 = vadd.f32 %v593, %v596
    %vm598 = vweird.f32 %v577
    %vm599 = vweird.f32 %v593
    %vm600 = vmor %vm598, %vm599
    %v601 = vsel %vm600, %v593, %v597
    %v602 = vand.u32 2147483647, %v577
    %vm603 = vcmp.eq.f32.partialorder %v602, 8.507059e+37
    %v604 = vand.u32 %v577, 2147483648
    %v605 = vor.u32 1.1754944e-38, %v604
    %v606 = vsel %vm603, %v605, %v601
    %v607 = vmul.f32 1.0, %v606
    %v608 = vtanh.pop %v568
    %v609 = vtanh.pop %v569
    %v610 = vsel %vm137, %v608, %v592
    %v611 = vsel %vm138, %v609, %v607
    %v613 = vrot.slane %v517, 6
    %v615 = vmul.f32 %v610, %v613
    %v616 = vmul.f32 %v610, %v611
    %618 = vrot.lane.b32.xlu0 %v616, 64
    %v619 = vpop.permute.xlu0 %618
    %v621 = vadd.f32 %v615, %v619
    %v622 = vtanh.pop %v621
    %v623 = vmul.f32 %v611, %v622
    %625 = vrot.lane.b32.xlu0 %v623, 64
    %v626 = vpop.permute.xlu0 %625
    %vm628 = vcmask 261126
    %629 = vst.msk [vmem:[#allocation2] sm:$0xc0] %vm628, %v626
    %vm630 = vcmask 523526
    %631 = vst.msk [vmem:[#allocation2 + $0x2] sm:$0xc0] %vm630, %v626
    %v634 = vrot.slane %v198, 6
    %v635 = vrot.slane %v212, 6
    %v638 = vsel %vm131, %v200, %v634
    %v639 = vsel %vm132, %v214, %v635
    %v640 = vpack.c.bf16 %v623, %v623
    %v642 = vrot.slane %v640, 3
    %643 = vrot.lane.b32.xlu0 %v642, 64
    %v644 = vpop.permute.xlu0 %643
    %v646 = vsel %vm224, %v644, 0
    %648 = vmatpush.bf16.msra.mxu0 0
    %649 = vmatpush.bf16.msra.mxu0 0
    %650 = vmatpush.bf16.msra.mxu0 0
    %651 = vmatpush.bf16.msra.mxu0 0
    %652 = vmatpush.bf16.msra.mxu0 %v176
    %653 = vmatpush.bf16.msra.mxu0 %v174
    %654 = vmatpush.bf16.msra.mxu0 %v172
    %655 = vmatpush.bf16.msra.mxu0 %v170
    %656 = vmatmul.bf16.gmra.mxu0 %v646
    %v657 = vpop.f32.mrf.mxu0
    %v658 = vadd.f32 0.0, %v657
    %v659 = vpop.f32.mrf.mxu0
    %660 = vdwg.mxu0
    %661 = vmatpush.bf16.msra.mxu0 0
    %662 = vmatpush.bf16.msra.mxu0 0
    %663 = vmatpush.bf16.msra.mxu0 0
    %664 = vmatpush.bf16.msra.mxu0 0
    %665 = vmatpush.bf16.msra.mxu0 %v177
    %666 = vmatpush.bf16.msra.mxu0 %v175
    %667 = vmatpush.bf16.msra.mxu0 %v173
    %668 = vmatpush.bf16.msra.mxu0 %v171
    %669 = vmatmul.bf16.gmra.mxu0 %v646
    %v670 = vpop.f32.mrf.mxu0
    %v671 = vadd.f32 0.0, %v670
    %v672 = vpop.f32.mrf.mxu0
    %673 = vdwg.mxu0
    %v674 = vadd.f32 %v638, %v658
    %v675 = vadd.f32 %v639, %v671
    %v676 = vxor.u32 %v674, 2147483648
    %v677 = vxor.u32 %v675, 2147483648
    %v678 = vmul.f32 %v676, 1.442695
    %v679 = vpow.pop %v678
    %v680 = vmul.f32 %v677, 1.442695
    %v681 = vpow.pop %v680
    %v682 = vadd.f32 %v679, 1.0
    %v683 = vadd.f32 %v681, 1.0
    %v684 = vrcp.pop %v682
    %v685 = vmul.f32 %v682, %v684
    %v686 = vsub.f32 1.0, %v685
    %v687 = vmul.f32 %v684, %v686
    %v688 = vadd.f32 %v684, %v687
    %vm689 = vweird.f32 %v682
    %vm690 = vweird.f32 %v684
    %vm691 = vmor %vm689, %vm690
    %v692 = vsel %vm691, %v684, %v688
    %v693 = vand.u32 2147483647, %v682
    %vm694 = vcmp.eq.f32.partialorder %v693, 8.507059e+37
    %v695 = vand.u32 %v682, 2147483648
    %v696 = vor.u32 1.1754944e-38, %v695
    %v697 = vsel %vm694, %v696, %v692
    %v698 = vmul.f32 1.0, %v697
    %v699 = vrcp.pop %v683
    %v700 = vmul.f32 %v683, %v699
    %v701 = vsub.f32 1.0, %v700
    %v702 = vmul.f32 %v699, %v701
    %v703 = vadd.f32 %v699, %v702
    %vm704 = vweird.f32 %v683
    %vm705 = vweird.f32 %v699
    %vm706 = vmor %vm704, %vm705
    %v707 = vsel %vm706, %v699, %v703
    %v708 = vand.u32 2147483647, %v683
    %vm709 = vcmp.eq.f32.partialorder %v708, 8.507059e+37
    %v710 = vand.u32 %v683, 2147483648
    %v711 = vor.u32 1.1754944e-38, %v710
    %v712 = vsel %vm709, %v711, %v707
    %v713 = vmul.f32 1.0, %v712
    %v714 = vtanh.pop %v674
    %v715 = vtanh.pop %v675
    %v716 = vsel %vm137, %v714, %v698
    %v717 = vsel %vm138, %v715, %v713
    %v719 = vrot.slane %v621, 6
    %v721 = vmul.f32 %v716, %v719
    %v722 = vmul.f32 %v716, %v717
    %724 = vrot.lane.b32.xlu0 %v722, 64
    %v725 = vpop.permute.xlu0 %724
    %v727 = vadd.f32 %v721, %v725
    %v728 = vtanh.pop %v727
    %v729 = vmul.f32 %v717, %v728
    %731 = vrot.lane.b32.xlu0 %v729, 64
    %v732 = vpop.permute.xlu0 %731
    %734 = vst.msk [vmem:[#allocation2 + $0x8] sm:$0x3] %vm311, %v732
    %735 = vst.msk [vmem:[#allocation2 + $0x6] sm:$0x3] %vm313, %v732
    %v736 = vrot.slane %v198, 2
    %v737 = vrot.slane %v212, 2
    %v740 = vsel %vm131, %v200, %v736
    %v741 = vsel %vm132, %v214, %v737
    %v742 = vpack.c.bf16 %v729, %v729
    %744 = vrot.lane.b32.xlu0 %v742, 64
    %v745 = vpop.permute.xlu0 %744
    %v747 = vsel %vm224, %v745, 0
    %749 = vmatpush.bf16.msra.mxu0 0
    %750 = vmatpush.bf16.msra.mxu0 0
    %751 = vmatpush.bf16.msra.mxu0 0
    %752 = vmatpush.bf16.msra.mxu0 0
    %753 = vmatpush.bf16.msra.mxu0 %v176
    %754 = vmatpush.bf16.msra.mxu0 %v174
    %755 = vmatpush.bf16.msra.mxu0 %v172
    %756 = vmatpush.bf16.msra.mxu0 %v170
    %757 = vmatmul.bf16.gmra.mxu0 %v747
    %v758 = vpop.f32.mrf.mxu0
    %v759 = vadd.f32 0.0, %v758
    %v760 = vpop.f32.mrf.mxu0
    %761 = vdwg.mxu0
    %762 = vmatpush.bf16.msra.mxu0 0
    %763 = vmatpush.bf16.msra.mxu0 0
    %764 = vmatpush.bf16.msra.mxu0 0
    %765 = vmatpush.bf16.msra.mxu0 0
    %766 = vmatpush.bf16.msra.mxu0 %v177
    %767 = vmatpush.bf16.msra.mxu0 %v175
    %768 = vmatpush.bf16.msra.mxu0 %v173
    %769 = vmatpush.bf16.msra.mxu0 %v171
    %770 = vmatmul.bf16.gmra.mxu0 %v747
    %v771 = vpop.f32.mrf.mxu0
    %v772 = vadd.f32 0.0, %v771
    %v773 = vpop.f32.mrf.mxu0
    %774 = vdwg.mxu0
    %v777 = vrot.slane %v759, 6
    %v778 = vrot.slane %v772, 6
    %v781 = vadd.f32 %v740, %v777
    %v782 = vadd.f32 %v741, %v778
    %v783 = vxor.u32 %v781, 2147483648
    %v784 = vxor.u32 %v782, 2147483648
    %v785 = vmul.f32 %v783, 1.442695
    %v786 = vpow.pop %v785
    %v787 = vmul.f32 %v784, 1.442695
    %v788 = vpow.pop %v787
    %v789 = vadd.f32 %v786, 1.0
    %v790 = vadd.f32 %v788, 1.0
    %v791 = vrcp.pop %v789
    %v792 = vmul.f32 %v789, %v791
    %v793 = vsub.f32 1.0, %v792
    %v794 = vmul.f32 %v791, %v793
    %v795 = vadd.f32 %v791, %v794
    %vm796 = vweird.f32 %v789
    %vm797 = vweird.f32 %v791
    %vm798 = vmor %vm796, %vm797
    %v799 = vsel %vm798, %v791, %v795
    %v800 = vand.u32 2147483647, %v789
    %vm801 = vcmp.eq.f32.partialorder %v800, 8.507059e+37
    %v802 = vand.u32 %v789, 2147483648
    %v803 = vor.u32 1.1754944e-38, %v802
    %v804 = vsel %vm801, %v803, %v799
    %v805 = vmul.f32 1.0, %v804
    %v806 = vrcp.pop %v790
    %v807 = vmul.f32 %v790, %v806
    %v808 = vsub.f32 1.0, %v807
    %v809 = vmul.f32 %v806, %v808
    %v810 = vadd.f32 %v806, %v809
    %vm811 = vweird.f32 %v790
    %vm812 = vweird.f32 %v806
    %vm813 = vmor %vm811, %vm812
    %v814 = vsel %vm813, %v806, %v810
    %v815 = vand.u32 2147483647, %v790
    %vm816 = vcmp.eq.f32.partialorder %v815, 8.507059e+37
    %v817 = vand.u32 %v790, 2147483648
    %v818 = vor.u32 1.1754944e-38, %v817
    %v819 = vsel %vm816, %v818, %v814
    %v820 = vmul.f32 1.0, %v819
    %v821 = vtanh.pop %v781
    %v822 = vtanh.pop %v782
    %v823 = vsel %vm137, %v821, %v805
    %v824 = vsel %vm138, %v822, %v820
    %v826 = vrot.slane %v727, 6
    %v828 = vmul.f32 %v823, %v826
    %v829 = vmul.f32 %v823, %v824
    %831 = vrot.lane.b32.xlu0 %v829, 64
    %v832 = vpop.permute.xlu0 %831
    %v834 = vadd.f32 %v828, %v832
    %v835 = vtanh.pop %v834
    %v836 = vmul.f32 %v824, %v835
    %838 = vrot.lane.b32.xlu0 %v836, 64
    %v839 = vpop.permute.xlu0 %838
    %841 = vst.msk [vmem:[#allocation2 + $0x8] sm:$0xc] %vm420, %v839
    %842 = vst.msk [vmem:[#allocation2 + $0x2] sm:$0xc] %vm422, %v839
    %v843 = vpack.c.bf16 %v836, %v836
    %v845 = vrot.slane %v843, 1
    %846 = vrot.lane.b32.xlu0 %v845, 64
    %v847 = vpop.permute.xlu0 %846
    %v849 = vsel %vm224, %v847, 0
    %851 = vmatpush.bf16.msra.mxu0 0
    %852 = vmatpush.bf16.msra.mxu0 0
    %853 = vmatpush.bf16.msra.mxu0 0
    %854 = vmatpush.bf16.msra.mxu0 0
    %855 = vmatpush.bf16.msra.mxu0 %v176
    %856 = vmatpush.bf16.msra.mxu0 %v174
    %857 = vmatpush.bf16.msra.mxu0 %v172
    %858 = vmatpush.bf16.msra.mxu0 %v170
    %859 = vmatmul.bf16.gmra.mxu0 %v849
    %v860 = vpop.f32.mrf.mxu0
    %v861 = vadd.f32 0.0, %v860
    %v862 = vpop.f32.mrf.mxu0
    %863 = vdwg.mxu0
    %864 = vmatpush.bf16.msra.mxu0 0
    %865 = vmatpush.bf16.msra.mxu0 0
    %866 = vmatpush.bf16.msra.mxu0 0
    %867 = vmatpush.bf16.msra.mxu0 0
    %868 = vmatpush.bf16.msra.mxu0 %v177
    %869 = vmatpush.bf16.msra.mxu0 %v175
    %870 = vmatpush.bf16.msra.mxu0 %v173
    %871 = vmatpush.bf16.msra.mxu0 %v171
    %872 = vmatmul.bf16.gmra.mxu0 %v849
    %v873 = vpop.f32.mrf.mxu0
    %v874 = vadd.f32 0.0, %v873
    %v875 = vpop.f32.mrf.mxu0
    %876 = vdwg.mxu0
    %v879 = vrot.slane %v861, 4
    %v880 = vrot.slane %v874, 4
    %v883 = vadd.f32 %v638, %v879
    %v884 = vadd.f32 %v639, %v880
    %v885 = vxor.u32 %v883, 2147483648
    %v886 = vxor.u32 %v884, 2147483648
    %v887 = vmul.f32 %v885, 1.442695
    %v888 = vpow.pop %v887
    %v889 = vmul.f32 %v886, 1.442695
    %v890 = vpow.pop %v889
    %v891 = vadd.f32 %v888, 1.0
    %v892 = vadd.f32 %v890, 1.0
    %v893 = vrcp.pop %v891
    %v894 = vmul.f32 %v891, %v893
    %v895 = vsub.f32 1.0, %v894
    %v896 = vmul.f32 %v893, %v895
    %v897 = vadd.f32 %v893, %v896
    %vm898 = vweird.f32 %v891
    %vm899 = vweird.f32 %v893
    %vm900 = vmor %vm898, %vm899
    %v901 = vsel %vm900, %v893, %v897
    %v902 = vand.u32 2147483647, %v891
    %vm903 = vcmp.eq.f32.partialorder %v902, 8.507059e+37
    %v904 = vand.u32 %v891, 2147483648
    %v905 = vor.u32 1.1754944e-38, %v904
    %v906 = vsel %vm903, %v905, %v901
    %v907 = vmul.f32 1.0, %v906
    %v908 = vrcp.pop %v892
    %v909 = vmul.f32 %v892, %v908
    %v910 = vsub.f32 1.0, %v909
    %v911 = vmul.f32 %v908, %v910
    %v912 = vadd.f32 %v908, %v911
    %vm913 = vweird.f32 %v892
    %vm914 = vweird.f32 %v908
    %vm915 = vmor %vm913, %vm914
    %v916 = vsel %vm915, %v908, %v912
    %v917 = vand.u32 2147483647, %v892
    %vm918 = vcmp.eq.f32.partialorder %v917, 8.507059e+37
    %v919 = vand.u32 %v892, 2147483648
    %v920 = vor.u32 1.1754944e-38, %v919
    %v921 = vsel %vm918, %v920, %v916
    %v922 = vmul.f32 1.0, %v921
    %v923 = vtanh.pop %v883
    %v924 = vtanh.pop %v884
    %v925 = vsel %vm137, %v923, %v907
    %v926 = vsel %vm138, %v924, %v922
    %v928 = vrot.slane %v834, 6
    %v930 = vmul.f32 %v925, %v928
    %v931 = vmul.f32 %v925, %v926
    %933 = vrot.lane.b32.xlu0 %v931, 64
    %v934 = vpop.permute.xlu0 %933
    %v936 = vadd.f32 %v930, %v934
    %v937 = vtanh.pop %v936
    %v938 = vmul.f32 %v926, %v937
    %940 = vrot.lane.b32.xlu0 %v938, 64
    %v941 = vpop.permute.xlu0 %940
    %943 = vst.msk [vmem:[#allocation2 + $0x8] sm:$0x30] %vm524, %v941
    %944 = vst.msk [vmem:[#allocation2 - $0x2] sm:$0x30] %vm526, %v941
    %v945 = vpack.c.bf16 %v938, %v938
    %v947 = vrot.slane %v945, 2
    %948 = vrot.lane.b32.xlu0 %v947, 64
    %v949 = vpop.permute.xlu0 %948
    %v951 = vsel %vm224, %v949, 0
    %953 = vmatpush.bf16.msra.mxu0 0
    %954 = vmatpush.bf16.msra.mxu0 0
    %955 = vmatpush.bf16.msra.mxu0 0
    %956 = vmatpush.bf16.msra.mxu0 0
    %957 = vmatpush.bf16.msra.mxu0 %v176
    %958 = vmatpush.bf16.msra.mxu0 %v174
    %959 = vmatpush.bf16.msra.mxu0 %v172
    %960 = vmatpush.bf16.msra.mxu0 %v170
    %961 = vmatmul.bf16.gmra.mxu0 %v951
    %v962 = vpop.f32.mrf.mxu0
    %v963 = vadd.f32 0.0, %v962
    %v964 = vpop.f32.mrf.mxu0
    %965 = vdwg.mxu0
    %966 = vmatpush.bf16.msra.mxu0 0
    %967 = vmatpush.bf16.msra.mxu0 0
    %968 = vmatpush.bf16.msra.mxu0 0
    %969 = vmatpush.bf16.msra.mxu0 0
    %970 = vmatpush.bf16.msra.mxu0 %v177
    %971 = vmatpush.bf16.msra.mxu0 %v175
    %972 = vmatpush.bf16.msra.mxu0 %v173
    %973 = vmatpush.bf16.msra.mxu0 %v171
    %974 = vmatmul.bf16.gmra.mxu0 %v951
    %v975 = vpop.f32.mrf.mxu0
    %v976 = vadd.f32 0.0, %v975
    %v977 = vpop.f32.mrf.mxu0
    %978 = vdwg.mxu0
    %v981 = vrot.slane %v963, 2
    %v982 = vrot.slane %v976, 2
    %v985 = vadd.f32 %v740, %v981
    %v986 = vadd.f32 %v741, %v982
    %v987 = vxor.u32 %v985, 2147483648
    %v988 = vxor.u32 %v986, 2147483648
    %v989 = vmul.f32 %v987, 1.442695
    %v990 = vpow.pop %v989
    %v991 = vmul.f32 %v988, 1.442695
    %v992 = vpow.pop %v991
    %v993 = vadd.f32 %v990, 1.0
    %v994 = vadd.f32 %v992, 1.0
    %v995 = vrcp.pop %v993
    %v996 = vmul.f32 %v993, %v995
    %v997 = vsub.f32 1.0, %v996
    %v998 = vmul.f32 %v995, %v997
    %v999 = vadd.f32 %v995, %v998
    %vm1000 = vweird.f32 %v993
    %vm1001 = vweird.f32 %v995
    %vm1002 = vmor %vm1000, %vm1001
    %v1003 = vsel %vm1002, %v995, %v999
    %v1004 = vand.u32 2147483647, %v993
    %vm1005 = vcmp.eq.f32.partialorder %v1004, 8.507059e+37
    %v1006 = vand.u32 %v993, 2147483648
    %v1007 = vor.u32 1.1754944e-38, %v1006
    %v1008 = vsel %vm1005, %v1007, %v1003
    %v1009 = vmul.f32 1.0, %v1008
    %v1010 = vrcp.pop %v994
    %v1011 = vmul.f32 %v994, %v1010
    %v1012 = vsub.f32 1.0, %v1011
    %v1013 = vmul.f32 %v1010, %v1012
    %v1014 = vadd.f32 %v1010, %v1013
    %vm1015 = vweird.f32 %v994
    %vm1016 = vweird.f32 %v1010
    %vm1017 = vmor %vm1015, %vm1016
    %v1018 = vsel %vm1017, %v1010, %v1014
    %v1019 = vand.u32 2147483647, %v994
    %vm1020 = vcmp.eq.f32.partialorder %v1019, 8.507059e+37
    %v1021 = vand.u32 %v994, 2147483648
    %v1022 = vor.u32 1.1754944e-38, %v1021
    %v1023 = vsel %vm1020, %v1022, %v1018
    %v1024 = vmul.f32 1.0, %v1023
    %v1025 = vtanh.pop %v985
    %v1026 = vtanh.pop %v986
    %v1027 = vsel %vm137, %v1025, %v1009
    %v1028 = vsel %vm138, %v1026, %v1024
    %v1030 = vrot.slane %v936, 6
    %v1032 = vmul.f32 %v1027, %v1030
    %v1033 = vmul.f32 %v1027, %v1028
    %1035 = vrot.lane.b32.xlu0 %v1033, 64
    %v1036 = vpop.permute.xlu0 %1035
    %v1038 = vadd.f32 %v1032, %v1036
    %v1039 = vtanh.pop %v1038
    %v1040 = vmul.f32 %v1028, %v1039
    %1042 = vrot.lane.b32.xlu0 %v1040, 64
    %v1043 = vpop.permute.xlu0 %1042
    %1045 = vst.msk [vmem:[#allocation2 + $0x8] sm:$0xc0] %vm628, %v1043
    %1046 = vst.msk [vmem:[#allocation2 - $0x6] sm:$0xc0] %vm630, %v1043
    %v1047 = vld [vmem:[#allocation2] sm:$0xff]
    %v1048 = vld [vmem:[#allocation2 + $0x8] sm:$0xff]
    %v1049 = vld [vmem:[#allocation3 + $0xd0] sm:$0xff]
    %v1050 = vld [vmem:[#allocation3 + $0xd8] sm:$0xff]
    %v1051 = vld [vmem:[#allocation3 + $0xe0] sm:$0xff]
    %v1052 = vld [vmem:[#allocation3 + $0xe8] sm:$0xff]
    %v1053 = vld [vmem:[#allocation3 + $0xf0] sm:$0xff]
    %v1054 = vld [vmem:[#allocation3 + $0xf8] sm:$0xff]
    %v1055 = vld [vmem:[#allocation3 + $0x100] sm:$0xff]
    %v1056 = vld [vmem:[#allocation3 + $0x108] sm:$0xff]
    %v1057 = vld [vmem:[#allocation3 + $0x110] sm:$0xff]
    %v1058 = vld [vmem:[#allocation3 + $0x118] sm:$0xff]
    %v1059 = vld [vmem:[#allocation3 + $0x120] sm:$0xff]
    %v1060 = vld [vmem:[#allocation3 + $0x128] sm:$0xff]
    %v1061 = vld [vmem:[#allocation3 + $0x130] sm:$0xff]
    %v1062 = vld [vmem:[#allocation3 + $0x138] sm:$0xff]
    %v1063 = vld [vmem:[#allocation3 + $0x140] sm:$0xff]
    %v1064 = vld [vmem:[#allocation3 + $0x148] sm:$0xff]
    %v1065 = vld [vmem:[#allocation3 + $0x150] sm:$0xff]
    %v1066 = vld [vmem:[#allocation3 + $0x158] sm:$0xff]
    %v1067 = vld [vmem:[#allocation3 + $0x160] sm:$0xff]
    %v1068 = vld [vmem:[#allocation3 + $0x168] sm:$0xff]
    %v1069 = vld [vmem:[#allocation3 + $0x170] sm:$0xff]
    %v1070 = vld [vmem:[#allocation3 + $0x178] sm:$0xff]
    %v1071 = vld [vmem:[#allocation3 + $0x180] sm:$0xff]
    %v1072 = vld [vmem:[#allocation3 + $0x188] sm:$0xff]
    %v1073 = vld [vmem:[#allocation3 + $0x190] sm:$0xff]
    %v1074 = vld [vmem:[#allocation3 + $0x198] sm:$0xff]
    %v1075 = vld [vmem:[#allocation3 + $0x1a0] sm:$0xff]
    %v1076 = vld [vmem:[#allocation3 + $0x1a8] sm:$0xff]
    %v1077 = vld [vmem:[#allocation3 + $0x1b0] sm:$0xff]
    %v1078 = vld [vmem:[#allocation3 + $0x1b8] sm:$0xff]
    %v1079 = vld [vmem:[#allocation3 + $0x1c0] sm:$0xff]
    %v1080 = vld [vmem:[#allocation3 + $0x1c8] sm:$0xff]
    %s1081 = scalar_lea.vmem [#allocation3], 464
    %v1082 = vld [vmem:[%s1081] ss:$8 sm:$0x3]
    %v1083 = vpack.c.bf16 %v1051, %v1049
    %v1084 = vpack.c.bf16 %v1052, %v1050
    %v1085 = vpack.c.bf16 %v1055, %v1053
    %v1086 = vpack.c.bf16 %v1056, %v1054
    %v1087 = vpack.c.bf16 %v1059, %v1057
    %v1088 = vpack.c.bf16 %v1060, %v1058
    %v1089 = vpack.c.bf16 %v1063, %v1061
    %v1090 = vpack.c.bf16 %v1064, %v1062
    %v1091 = vpack.c.bf16 %v1067, %v1065
    %v1092 = vpack.c.bf16 %v1068, %v1066
    %v1093 = vpack.c.bf16 %v1071, %v1069
    %v1094 = vpack.c.bf16 %v1072, %v1070
    %v1095 = vpack.c.bf16 %v1075, %v1073
    %v1096 = vpack.c.bf16 %v1076, %v1074
    %v1097 = vpack.c.bf16 %v1079, %v1077
    %v1098 = vpack.c.bf16 %v1080, %v1078
    %v1099 = vpack.c.bf16 %v1048, %v1047
    %v1101 = vperm.slane %v1082, 0
    %v1102 = vperm.slane %v1082, 1
    %v1106 = vsel %vm224, %v1099, 0
    %1108 = vmatpush.bf16.msra.mxu0 0
    %1109 = vmatpush.bf16.msra.mxu0 0
    %1110 = vmatpush.bf16.msra.mxu0 0
    %1111 = vmatpush.bf16.msra.mxu0 0
    %1112 = vmatpush.bf16.msra.mxu0 %v1089
    %1113 = vmatpush.bf16.msra.mxu0 %v1087
    %1114 = vmatpush.bf16.msra.mxu0 %v1085
    %1115 = vmatpush.bf16.msra.mxu0 %v1083
    %1116 = vmatmul.bf16.gmra.mxu0 %v1106
    %v1117 = vpop.f32.mrf.mxu0
    %v1118 = vadd.f32 %v1101, %v1117
    %v1119 = vpop.f32.mrf.mxu0
    %v1120 = vadd.f32 %v1101, %v1119
    %1121 = vdwg.mxu0
    %1122 = vmatpush.bf16.msra.mxu0 0
    %1123 = vmatpush.bf16.msra.mxu0 0
    %1124 = vmatpush.bf16.msra.mxu0 0
    %1125 = vmatpush.bf16.msra.mxu0 0
    %1126 = vmatpush.bf16.msra.mxu0 %v1090
    %1127 = vmatpush.bf16.msra.mxu0 %v1088
    %1128 = vmatpush.bf16.msra.mxu0 %v1086
    %1129 = vmatpush.bf16.msra.mxu0 %v1084
    %1130 = vmatmul.bf16.gmra.mxu0 %v1106
    %v1131 = vpop.f32.mrf.mxu0
    %v1132 = vadd.f32 %v1102, %v1131
    %v1133 = vpop.f32.mrf.mxu0
    %v1134 = vadd.f32 %v1102, %v1133
    %1135 = vdwg.mxu0
    %v1138 = vrot.slane %v1120, 6
    %v1139 = vrot.slane %v1134, 6
    %v1142 = vsel %vm131, %v1118, %v1138
    %v1143 = vsel %vm132, %v1132, %v1139
    %1144 = vmatpush.bf16.msra.mxu0 0
    %1145 = vmatpush.bf16.msra.mxu0 0
    %1146 = vmatpush.bf16.msra.mxu0 0
    %1147 = vmatpush.bf16.msra.mxu0 0
    %1148 = vmatpush.bf16.msra.mxu0 %v1097
    %1149 = vmatpush.bf16.msra.mxu0 %v1095
    %1150 = vmatpush.bf16.msra.mxu0 %v1093
    %1151 = vmatpush.bf16.msra.mxu0 %v1091
    %1152 = vmatmul.bf16.gmra.mxu0 %v226
    %v1153 = vpop.f32.mrf.mxu0
    %v1154 = vadd.f32 0.0, %v1153
    %v1155 = vpop.f32.mrf.mxu0
    %1156 = vdwg.mxu0
    %1157 = vmatpush.bf16.msra.mxu0 0
    %1158 = vmatpush.bf16.msra.mxu0 0
    %1159 = vmatpush.bf16.msra.mxu0 0
    %1160 = vmatpush.bf16.msra.mxu0 0
    %1161 = vmatpush.bf16.msra.mxu0 %v1098
    %1162 = vmatpush.bf16.msra.mxu0 %v1096
    %1163 = vmatpush.bf16.msra.mxu0 %v1094
    %1164 = vmatpush.bf16.msra.mxu0 %v1092
    %1165 = vmatmul.bf16.gmra.mxu0 %v226
    %v1166 = vpop.f32.mrf.mxu0
    %v1167 = vadd.f32 0.0, %v1166
    %v1168 = vpop.f32.mrf.mxu0
    %1169 = vdwg.mxu0
    %v1170 = vadd.f32 %v1142, %v1154
    %v1171 = vadd.f32 %v1143, %v1167
    %v1172 = vxor.u32 %v1170, 2147483648
    %v1173 = vxor.u32 %v1171, 2147483648
    %v1174 = vmul.f32 %v1172, 1.442695
    %v1175 = vpow.pop %v1174
    %v1176 = vmul.f32 %v1173, 1.442695
    %v1177 = vpow.pop %v1176
    %v1178 = vadd.f32 %v1175, 1.0
    %v1179 = vadd.f32 %v1177, 1.0
    %v1180 = vrcp.pop %v1178
    %v1181 = vmul.f32 %v1178, %v1180
    %v1182 = vsub.f32 1.0, %v1181
    %v1183 = vmul.f32 %v1180, %v1182
    %v1184 = vadd.f32 %v1180, %v1183
    %vm1185 = vweird.f32 %v1178
    %vm1186 = vweird.f32 %v1180
    %vm1187 = vmor %vm1185, %vm1186
    %v1188 = vsel %vm1187, %v1180, %v1184
    %v1189 = vand.u32 2147483647, %v1178
    %vm1190 = vcmp.eq.f32.partialorder %v1189, 8.507059e+37
    %v1191 = vand.u32 %v1178, 2147483648
    %v1192 = vor.u32 1.1754944e-38, %v1191
    %v1193 = vsel %vm1190, %v1192, %v1188
    %v1194 = vmul.f32 1.0, %v1193
    %v1195 = vrcp.pop %v1179
    %v1196 = vmul.f32 %v1179, %v1195
    %v1197 = vsub.f32 1.0, %v1196
    %v1198 = vmul.f32 %v1195, %v1197
    %v1199 = vadd.f32 %v1195, %v1198
    %vm1200 = vweird.f32 %v1179
    %vm1201 = vweird.f32 %v1195
    %vm1202 = vmor %vm1200, %vm1201
    %v1203 = vsel %vm1202, %v1195, %v1199
    %v1204 = vand.u32 2147483647, %v1179
    %vm1205 = vcmp.eq.f32.partialorder %v1204, 8.507059e+37
    %v1206 = vand.u32 %v1179, 2147483648
    %v1207 = vor.u32 1.1754944e-38, %v1206
    %v1208 = vsel %vm1205, %v1207, %v1203
    %v1209 = vmul.f32 1.0, %v1208
    %v1210 = vtanh.pop %v1170
    %v1211 = vtanh.pop %v1171
    %v1212 = vsel %vm137, %v1210, %v1194
    %v1213 = vsel %vm138, %v1211, %v1209
    %v1214 = vmul.f32 %v1212, 0.0
    %v1215 = vmul.f32 %v1212, %v1213
    %1217 = vrot.lane.b32.xlu0 %v1215, 64
    %v1218 = vpop.permute.xlu0 %1217
    %v1220 = vadd.f32 %v1214, %v1218
    %v1221 = vtanh.pop %v1220
    %v1222 = vmul.f32 %v1213, %v1221
    %v1223 = vrot.slane %v1120, 2
    %v1224 = vrot.slane %v1134, 2
    %v1227 = vsel %vm131, %v1118, %v1223
    %v1228 = vsel %vm132, %v1132, %v1224
    %v1229 = vpack.c.bf16 %v1222, %v1222
    %1231 = vrot.lane.b32.xlu0 %v1229, 64
    %v1232 = vpop.permute.xlu0 %1231
    %v1234 = vsel %vm224, %v1232, 0
    %1236 = vmatpush.bf16.msra.mxu0 0
    %1237 = vmatpush.bf16.msra.mxu0 0
    %1238 = vmatpush.bf16.msra.mxu0 0
    %1239 = vmatpush.bf16.msra.mxu0 0
    %1240 = vmatpush.bf16.msra.mxu0 %v1097
    %1241 = vmatpush.bf16.msra.mxu0 %v1095
    %1242 = vmatpush.bf16.msra.mxu0 %v1093
    %1243 = vmatpush.bf16.msra.mxu0 %v1091
    %1244 = vmatmul.bf16.gmra.mxu0 %v1234
    %v1245 = vpop.f32.mrf.mxu0
    %v1246 = vadd.f32 0.0, %v1245
    %v1247 = vpop.f32.mrf.mxu0
    %1248 = vdwg.mxu0
    %1249 = vmatpush.bf16.msra.mxu0 0
    %1250 = vmatpush.bf16.msra.mxu0 0
    %1251 = vmatpush.bf16.msra.mxu0 0
    %1252 = vmatpush.bf16.msra.mxu0 0
    %1253 = vmatpush.bf16.msra.mxu0 %v1098
    %1254 = vmatpush.bf16.msra.mxu0 %v1096
    %1255 = vmatpush.bf16.msra.mxu0 %v1094
    %1256 = vmatpush.bf16.msra.mxu0 %v1092
    %1257 = vmatmul.bf16.gmra.mxu0 %v1234
    %v1258 = vpop.f32.mrf.mxu0
    %v1259 = vadd.f32 0.0, %v1258
    %v1260 = vpop.f32.mrf.mxu0
    %1261 = vdwg.mxu0
    %v1264 = vrot.slane %v1246, 6
    %v1265 = vrot.slane %v1259, 6
    %v1268 = vadd.f32 %v1227, %v1264
    %v1269 = vadd.f32 %v1228, %v1265
    %v1270 = vxor.u32 %v1268, 2147483648
    %v1271 = vxor.u32 %v1269, 2147483648
    %v1272 = vmul.f32 %v1270, 1.442695
    %v1273 = vpow.pop %v1272
    %v1274 = vmul.f32 %v1271, 1.442695
    %v1275 = vpow.pop %v1274
    %v1276 = vadd.f32 %v1273, 1.0
    %v1277 = vadd.f32 %v1275, 1.0
    %v1278 = vrcp.pop %v1276
    %v1279 = vmul.f32 %v1276, %v1278
    %v1280 = vsub.f32 1.0, %v1279
    %v1281 = vmul.f32 %v1278, %v1280
    %v1282 = vadd.f32 %v1278, %v1281
    %vm1283 = vweird.f32 %v1276
    %vm1284 = vweird.f32 %v1278
    %vm1285 = vmor %vm1283, %vm1284
    %v1286 = vsel %vm1285, %v1278, %v1282
    %v1287 = vand.u32 2147483647, %v1276
    %vm1288 = vcmp.eq.f32.partialorder %v1287, 8.507059e+37
    %v1289 = vand.u32 %v1276, 2147483648
    %v1290 = vor.u32 1.1754944e-38, %v1289
    %v1291 = vsel %vm1288, %v1290, %v1286
    %v1292 = vmul.f32 1.0, %v1291
    %v1293 = vrcp.pop %v1277
    %v1294 = vmul.f32 %v1277, %v1293
    %v1295 = vsub.f32 1.0, %v1294
    %v1296 = vmul.f32 %v1293, %v1295
    %v1297 = vadd.f32 %v1293, %v1296
    %vm1298 = vweird.f32 %v1277
    %vm1299 = vweird.f32 %v1293
    %vm1300 = vmor %vm1298, %vm1299
    %v1301 = vsel %vm1300, %v1293, %v1297
    %v1302 = vand.u32 2147483647, %v1277
    %vm1303 = vcmp.eq.f32.partialorder %v1302, 8.507059e+37
    %v1304 = vand.u32 %v1277, 2147483648
    %v1305 = vor.u32 1.1754944e-38, %v1304
    %v1306 = vsel %vm1303, %v1305, %v1301
    %v1307 = vmul.f32 1.0, %v1306
    %v1308 = vtanh.pop %v1268
    %v1309 = vtanh.pop %v1269
    %v1310 = vsel %vm137, %v1308, %v1292
    %v1311 = vsel %vm138, %v1309, %v1307
    %v1313 = vrot.slane %v1220, 6
    %v1315 = vmul.f32 %v1310, %v1313
    %v1316 = vmul.f32 %v1310, %v1311
    %1318 = vrot.lane.b32.xlu0 %v1316, 64
    %v1319 = vpop.permute.xlu0 %1318
    %v1321 = vadd.f32 %v1315, %v1319
    %v1322 = vtanh.pop %v1321
    %v1323 = vmul.f32 %v1311, %v1322
    %v1324 = vpack.c.bf16 %v1323, %v1323
    %v1326 = vrot.slane %v1324, 1
    %1327 = vrot.lane.b32.xlu0 %v1326, 64
    %v1328 = vpop.permute.xlu0 %1327
    %v1330 = vsel %vm224, %v1328, 0
    %1332 = vmatpush.bf16.msra.mxu0 0
    %1333 = vmatpush.bf16.msra.mxu0 0
    %1334 = vmatpush.bf16.msra.mxu0 0
    %1335 = vmatpush.bf16.msra.mxu0 0
    %1336 = vmatpush.bf16.msra.mxu0 %v1097
    %1337 = vmatpush.bf16.msra.mxu0 %v1095
    %1338 = vmatpush.bf16.msra.mxu0 %v1093
    %1339 = vmatpush.bf16.msra.mxu0 %v1091
    %1340 = vmatmul.bf16.gmra.mxu0 %v1330
    %v1341 = vpop.f32.mrf.mxu0
    %v1342 = vadd.f32 0.0, %v1341
    %v1343 = vpop.f32.mrf.mxu0
    %1344 = vdwg.mxu0
    %1345 = vmatpush.bf16.msra.mxu0 0
    %1346 = vmatpush.bf16.msra.mxu0 0
    %1347 = vmatpush.bf16.msra.mxu0 0
    %1348 = vmatpush.bf16.msra.mxu0 0
    %1349 = vmatpush.bf16.msra.mxu0 %v1098
    %1350 = vmatpush.bf16.msra.mxu0 %v1096
    %1351 = vmatpush.bf16.msra.mxu0 %v1094
    %1352 = vmatpush.bf16.msra.mxu0 %v1092
    %1353 = vmatmul.bf16.gmra.mxu0 %v1330
    %v1354 = vpop.f32.mrf.mxu0
    %v1355 = vadd.f32 0.0, %v1354
    %v1356 = vpop.f32.mrf.mxu0
    %1357 = vdwg.mxu0
    %v1360 = vrot.slane %v1342, 4
    %v1361 = vrot.slane %v1355, 4
    %v1364 = vadd.f32 %v1142, %v1360
    %v1365 = vadd.f32 %v1143, %v1361
    %v1366 = vxor.u32 %v1364, 2147483648
    %v1367 = vxor.u32 %v1365, 2147483648
    %v1368 = vmul.f32 %v1366, 1.442695
    %v1369 = vpow.pop %v1368
    %v1370 = vmul.f32 %v1367, 1.442695
    %v1371 = vpow.pop %v1370
    %v1372 = vadd.f32 %v1369, 1.0
    %v1373 = vadd.f32 %v1371, 1.0
    %v1374 = vrcp.pop %v1372
    %v1375 = vmul.f32 %v1372, %v1374
    %v1376 = vsub.f32 1.0, %v1375
    %v1377 = vmul.f32 %v1374, %v1376
    %v1378 = vadd.f32 %v1374, %v1377
    %vm1379 = vweird.f32 %v1372
    %vm1380 = vweird.f32 %v1374
    %vm1381 = vmor %vm1379, %vm1380
    %v1382 = vsel %vm1381, %v1374, %v1378
    %v1383 = vand.u32 2147483647, %v1372
    %vm1384 = vcmp.eq.f32.partialorder %v1383, 8.507059e+37
    %v1385 = vand.u32 %v1372, 2147483648
    %v1386 = vor.u32 1.1754944e-38, %v1385
    %v1387 = vsel %vm1384, %v1386, %v1382
    %v1388 = vmul.f32 1.0, %v1387
    %v1389 = vrcp.pop %v1373
    %v1390 = vmul.f32 %v1373, %v1389
    %v1391 = vsub.f32 1.0, %v1390
    %v1392 = vmul.f32 %v1389, %v1391
    %v1393 = vadd.f32 %v1389, %v1392
    %vm1394 = vweird.f32 %v1373
    %vm1395 = vweird.f32 %v1389
    %vm1396 = vmor %vm1394, %vm1395
    %v1397 = vsel %vm1396, %v1389, %v1393
    %v1398 = vand.u32 2147483647, %v1373
    %vm1399 = vcmp.eq.f32.partialorder %v1398, 8.507059e+37
    %v1400 = vand.u32 %v1373, 2147483648
    %v1401 = vor.u32 1.1754944e-38, %v1400
    %v1402 = vsel %vm1399, %v1401, %v1397
    %v1403 = vmul.f32 1.0, %v1402
    %v1404 = vtanh.pop %v1364
    %v1405 = vtanh.pop %v1365
    %v1406 = vsel %vm137, %v1404, %v1388
    %v1407 = vsel %vm138, %v1405, %v1403
    %v1409 = vrot.slane %v1321, 6
    %v1411 = vmul.f32 %v1406, %v1409
    %v1412 = vmul.f32 %v1406, %v1407
    %1414 = vrot.lane.b32.xlu0 %v1412, 64
    %v1415 = vpop.permute.xlu0 %1414
    %v1417 = vadd.f32 %v1411, %v1415
    %v1418 = vtanh.pop %v1417
    %v1419 = vmul.f32 %v1407, %v1418
    %v1420 = vpack.c.bf16 %v1419, %v1419
    %v1422 = vrot.slane %v1420, 2
    %1423 = vrot.lane.b32.xlu0 %v1422, 64
    %v1424 = vpop.permute.xlu0 %1423
    %v1426 = vsel %vm224, %v1424, 0
    %1428 = vmatpush.bf16.msra.mxu0 0
    %1429 = vmatpush.bf16.msra.mxu0 0
    %1430 = vmatpush.bf16.msra.mxu0 0
    %1431 = vmatpush.bf16.msra.mxu0 0
    %1432 = vmatpush.bf16.msra.mxu0 %v1097
    %1433 = vmatpush.bf16.msra.mxu0 %v1095
    %1434 = vmatpush.bf16.msra.mxu0 %v1093
    %1435 = vmatpush.bf16.msra.mxu0 %v1091
    %1436 = vmatmul.bf16.gmra.mxu0 %v1426
    %v1437 = vpop.f32.mrf.mxu0
    %v1438 = vadd.f32 0.0, %v1437
    %v1439 = vpop.f32.mrf.mxu0
    %1440 = vdwg.mxu0
    %1441 = vmatpush.bf16.msra.mxu0 0
    %1442 = vmatpush.bf16.msra.mxu0 0
    %1443 = vmatpush.bf16.msra.mxu0 0
    %1444 = vmatpush.bf16.msra.mxu0 0
    %1445 = vmatpush.bf16.msra.mxu0 %v1098
    %1446 = vmatpush.bf16.msra.mxu0 %v1096
    %1447 = vmatpush.bf16.msra.mxu0 %v1094
    %1448 = vmatpush.bf16.msra.mxu0 %v1092
    %1449 = vmatmul.bf16.gmra.mxu0 %v1426
    %v1450 = vpop.f32.mrf.mxu0
    %v1451 = vadd.f32 0.0, %v1450
    %v1452 = vpop.f32.mrf.mxu0
    %1453 = vdwg.mxu0
    %v1456 = vrot.slane %v1438, 2
    %v1457 = vrot.slane %v1451, 2
    %v1460 = vadd.f32 %v1227, %v1456
    %v1461 = vadd.f32 %v1228, %v1457
    %v1462 = vxor.u32 %v1460, 2147483648
    %v1463 = vxor.u32 %v1461, 2147483648
    %v1464 = vmul.f32 %v1462, 1.442695
    %v1465 = vpow.pop %v1464
    %v1466 = vmul.f32 %v1463, 1.442695
    %v1467 = vpow.pop %v1466
    %v1468 = vadd.f32 %v1465, 1.0
    %v1469 = vadd.f32 %v1467, 1.0
    %v1470 = vrcp.pop %v1468
    %v1471 = vmul.f32 %v1468, %v1470
    %v1472 = vsub.f32 1.0, %v1471
    %v1473 = vmul.f32 %v1470, %v1472
    %v1474 = vadd.f32 %v1470, %v1473
    %vm1475 = vweird.f32 %v1468
    %vm1476 = vweird.f32 %v1470
    %vm1477 = vmor %vm1475, %vm1476
    %v1478 = vsel %vm1477, %v1470, %v1474
    %v1479 = vand.u32 2147483647, %v1468
    %vm1480 = vcmp.eq.f32.partialorder %v1479, 8.507059e+37
    %v1481 = vand.u32 %v1468, 2147483648
    %v1482 = vor.u32 1.1754944e-38, %v1481
    %v1483 = vsel %vm1480, %v1482, %v1478
    %v1484 = vmul.f32 1.0, %v1483
    %v1485 = vrcp.pop %v1469
    %v1486 = vmul.f32 %v1469, %v1485
    %v1487 = vsub.f32 1.0, %v1486
    %v1488 = vmul.f32 %v1485, %v1487
    %v1489 = vadd.f32 %v1485, %v1488
    %vm1490 = vweird.f32 %v1469
    %vm1491 = vweird.f32 %v1485
    %vm1492 = vmor %vm1490, %vm1491
    %v1493 = vsel %vm1492, %v1485, %v1489
    %v1494 = vand.u32 2147483647, %v1469
    %vm1495 = vcmp.eq.f32.partialorder %v1494, 8.507059e+37
    %v1496 = vand.u32 %v1469, 2147483648
    %v1497 = vor.u32 1.1754944e-38, %v1496
    %v1498 = vsel %vm1495, %v1497, %v1493
    %v1499 = vmul.f32 1.0, %v1498
    %v1500 = vtanh.pop %v1460
    %v1501 = vtanh.pop %v1461
    %v1502 = vsel %vm137, %v1500, %v1484
    %v1503 = vsel %vm138, %v1501, %v1499
    %v1505 = vrot.slane %v1417, 6
    %v1507 = vmul.f32 %v1502, %v1505
    %v1508 = vmul.f32 %v1502, %v1503
    %1510 = vrot.lane.b32.xlu0 %v1508, 64
    %v1511 = vpop.permute.xlu0 %1510
    %v1513 = vadd.f32 %v1507, %v1511
    %v1514 = vtanh.pop %v1513
    %v1515 = vmul.f32 %v1503, %v1514
    %v1518 = vrot.slane %v1118, 6
    %v1519 = vrot.slane %v1132, 6
    %v1522 = vsel %vm131, %v1120, %v1518
    %v1523 = vsel %vm132, %v1134, %v1519
    %v1524 = vpack.c.bf16 %v1515, %v1515
    %v1526 = vrot.slane %v1524, 3
    %1527 = vrot.lane.b32.xlu0 %v1526, 64
    %v1528 = vpop.permute.xlu0 %1527
    %v1530 = vsel %vm224, %v1528, 0
    %1532 = vmatpush.bf16.msra.mxu0 0
    %1533 = vmatpush.bf16.msra.mxu0 0
    %1534 = vmatpush.bf16.msra.mxu0 0
    %1535 = vmatpush.bf16.msra.mxu0 0
    %1536 = vmatpush.bf16.msra.mxu0 %v1097
    %1537 = vmatpush.bf16.msra.mxu0 %v1095
    %1538 = vmatpush.bf16.msra.mxu0 %v1093
    %1539 = vmatpush.bf16.msra.mxu0 %v1091
    %1540 = vmatmul.bf16.gmra.mxu0 %v1530
    %v1541 = vpop.f32.mrf.mxu0
    %v1542 = vadd.f32 0.0, %v1541
    %v1543 = vpop.f32.mrf.mxu0
    %1544 = vdwg.mxu0
    %1545 = vmatpush.bf16.msra.mxu0 0
    %1546 = vmatpush.bf16.msra.mxu0 0
    %1547 = vmatpush.bf16.msra.mxu0 0
    %1548 = vmatpush.bf16.msra.mxu0 0
    %1549 = vmatpush.bf16.msra.mxu0 %v1098
    %1550 = vmatpush.bf16.msra.mxu0 %v1096
    %1551 = vmatpush.bf16.msra.mxu0 %v1094
    %1552 = vmatpush.bf16.msra.mxu0 %v1092
    %1553 = vmatmul.bf16.gmra.mxu0 %v1530
    %v1554 = vpop.f32.mrf.mxu0
    %v1555 = vadd.f32 0.0, %v1554
    %v1556 = vpop.f32.mrf.mxu0
    %1557 = vdwg.mxu0
    %v1558 = vadd.f32 %v1522, %v1542
    %v1559 = vadd.f32 %v1523, %v1555
    %v1560 = vxor.u32 %v1558, 2147483648
    %v1561 = vxor.u32 %v1559, 2147483648
    %v1562 = vmul.f32 %v1560, 1.442695
    %v1563 = vpow.pop %v1562
    %v1564 = vmul.f32 %v1561, 1.442695
    %v1565 = vpow.pop %v1564
    %v1566 = vadd.f32 %v1563, 1.0
    %v1567 = vadd.f32 %v1565, 1.0
    %v1568 = vrcp.pop %v1566
    %v1569 = vmul.f32 %v1566, %v1568
    %v1570 = vsub.f32 1.0, %v1569
    %v1571 = vmul.f32 %v1568, %v1570
    %v1572 = vadd.f32 %v1568, %v1571
    %vm1573 = vweird.f32 %v1566
    %vm1574 = vweird.f32 %v1568
    %vm1575 = vmor %vm1573, %vm1574
    %v1576 = vsel %vm1575, %v1568, %v1572
    %v1577 = vand.u32 2147483647, %v1566
    %vm1578 = vcmp.eq.f32.partialorder %v1577, 8.507059e+37
    %v1579 = vand.u32 %v1566, 2147483648
    %v1580 = vor.u32 1.1754944e-38, %v1579
    %v1581 = vsel %vm1578, %v1580, %v1576
    %v1582 = vmul.f32 1.0, %v1581
    %v1583 = vrcp.pop %v1567
    %v1584 = vmul.f32 %v1567, %v1583
    %v1585 = vsub.f32 1.0, %v1584
    %v1586 = vmul.f32 %v1583, %v1585
    %v1587 = vadd.f32 %v1583, %v1586
    %vm1588 = vweird.f32 %v1567
    %vm1589 = vweird.f32 %v1583
    %vm1590 = vmor %vm1588, %vm1589
    %v1591 = vsel %vm1590, %v1583, %v1587
    %v1592 = vand.u32 2147483647, %v1567
    %vm1593 = vcmp.eq.f32.partialorder %v1592, 8.507059e+37
    %v1594 = vand.u32 %v1567, 2147483648
    %v1595 = vor.u32 1.1754944e-38, %v1594
    %v1596 = vsel %vm1593, %v1595, %v1591
    %v1597 = vmul.f32 1.0, %v1596
    %v1598 = vtanh.pop %v1558
    %v1599 = vtanh.pop %v1559
    %v1600 = vsel %vm137, %v1598, %v1582
    %v1601 = vsel %vm138, %v1599, %v1597
    %v1603 = vrot.slane %v1513, 6
    %v1605 = vmul.f32 %v1600, %v1603
    %v1606 = vmul.f32 %v1600, %v1601
    %1608 = vrot.lane.b32.xlu0 %v1606, 64
    %v1609 = vpop.permute.xlu0 %1608
    %v1611 = vadd.f32 %v1605, %v1609
    %v1612 = vtanh.pop %v1611
    %v1613 = vmul.f32 %v1601, %v1612
    %v1614 = vrot.slane %v1118, 2
    %v1615 = vrot.slane %v1132, 2
    %v1618 = vsel %vm131, %v1120, %v1614
    %v1619 = vsel %vm132, %v1134, %v1615
    %v1620 = vpack.c.bf16 %v1613, %v1613
    %1622 = vrot.lane.b32.xlu0 %v1620, 64
    %v1623 = vpop.permute.xlu0 %1622
    %v1625 = vsel %vm224, %v1623, 0
    %1627 = vmatpush.bf16.msra.mxu0 0
    %1628 = vmatpush.bf16.msra.mxu0 0
    %1629 = vmatpush.bf16.msra.mxu0 0
    %1630 = vmatpush.bf16.msra.mxu0 0
    %1631 = vmatpush.bf16.msra.mxu0 %v1097
    %1632 = vmatpush.bf16.msra.mxu0 %v1095
    %1633 = vmatpush.bf16.msra.mxu0 %v1093
    %1634 = vmatpush.bf16.msra.mxu0 %v1091
    %1635 = vmatmul.bf16.gmra.mxu0 %v1625
    %v1636 = vpop.f32.mrf.mxu0
    %v1637 = vadd.f32 0.0, %v1636
    %v1638 = vpop.f32.mrf.mxu0
    %1639 = vdwg.mxu0
    %1640 = vmatpush.bf16.msra.mxu0 0
    %1641 = vmatpush.bf16.msra.mxu0 0
    %1642 = vmatpush.bf16.msra.mxu0 0
    %1643 = vmatpush.bf16.msra.mxu0 0
    %1644 = vmatpush.bf16.msra.mxu0 %v1098
    %1645 = vmatpush.bf16.msra.mxu0 %v1096
    %1646 = vmatpush.bf16.msra.mxu0 %v1094
    %1647 = vmatpush.bf16.msra.mxu0 %v1092
    %1648 = vmatmul.bf16.gmra.mxu0 %v1625
    %v1649 = vpop.f32.mrf.mxu0
    %v1650 = vadd.f32 0.0, %v1649
    %v1651 = vpop.f32.mrf.mxu0
    %1652 = vdwg.mxu0
    %v1655 = vrot.slane %v1637, 6
    %v1656 = vrot.slane %v1650, 6
    %v1659 = vadd.f32 %v1618, %v1655
    %v1660 = vadd.f32 %v1619, %v1656
    %v1661 = vxor.u32 %v1659, 2147483648
    %v1662 = vxor.u32 %v1660, 2147483648
    %v1663 = vmul.f32 %v1661, 1.442695
    %v1664 = vpow.pop %v1663
    %v1665 = vmul.f32 %v1662, 1.442695
    %v1666 = vpow.pop %v1665
    %v1667 = vadd.f32 %v1664, 1.0
    %v1668 = vadd.f32 %v1666, 1.0
    %v1669 = vrcp.pop %v1667
    %v1670 = vmul.f32 %v1667, %v1669
    %v1671 = vsub.f32 1.0, %v1670
    %v1672 = vmul.f32 %v1669, %v1671
    %v1673 = vadd.f32 %v1669, %v1672
    %vm1674 = vweird.f32 %v1667
    %vm1675 = vweird.f32 %v1669
    %vm1676 = vmor %vm1674, %vm1675
    %v1677 = vsel %vm1676, %v1669, %v1673
    %v1678 = vand.u32 2147483647, %v1667
    %vm1679 = vcmp.eq.f32.partialorder %v1678, 8.507059e+37
    %v1680 = vand.u32 %v1667, 2147483648
    %v1681 = vor.u32 1.1754944e-38, %v1680
    %v1682 = vsel %vm1679, %v1681, %v1677
    %v1683 = vmul.f32 1.0, %v1682
    %v1684 = vrcp.pop %v1668
    %v1685 = vmul.f32 %v1668, %v1684
    %v1686 = vsub.f32 1.0, %v1685
    %v1687 = vmul.f32 %v1684, %v1686
    %v1688 = vadd.f32 %v1684, %v1687
    %vm1689 = vweird.f32 %v1668
    %vm1690 = vweird.f32 %v1684
    %vm1691 = vmor %vm1689, %vm1690
    %v1692 = vsel %vm1691, %v1684, %v1688
    %v1693 = vand.u32 2147483647, %v1668
    %vm1694 = vcmp.eq.f32.partialorder %v1693, 8.507059e+37
    %v1695 = vand.u32 %v1668, 2147483648
    %v1696 = vor.u32 1.1754944e-38, %v1695
    %v1697 = vsel %vm1694, %v1696, %v1692
    %v1698 = vmul.f32 1.0, %v1697
    %v1699 = vtanh.pop %v1659
    %v1700 = vtanh.pop %v1660
    %v1701 = vsel %vm137, %v1699, %v1683
    %v1702 = vsel %vm138, %v1700, %v1698
    %v1704 = vrot.slane %v1611, 6
    %v1706 = vmul.f32 %v1701, %v1704
    %v1707 = vmul.f32 %v1701, %v1702
    %1709 = vrot.lane.b32.xlu0 %v1707, 64
    %v1710 = vpop.permute.xlu0 %1709
    %v1712 = vadd.f32 %v1706, %v1710
    %v1713 = vtanh.pop %v1712
    %v1714 = vmul.f32 %v1702, %v1713
    %v1715 = vpack.c.bf16 %v1714, %v1714
    %v1717 = vrot.slane %v1715, 1
    %1718 = vrot.lane.b32.xlu0 %v1717, 64
    %v1719 = vpop.permute.xlu0 %1718
    %v1721 = vsel %vm224, %v1719, 0
    %1723 = vmatpush.bf16.msra.mxu0 0
    %1724 = vmatpush.bf16.msra.mxu0 0
    %1725 = vmatpush.bf16.msra.mxu0 0
    %1726 = vmatpush.bf16.msra.mxu0 0
    %1727 = vmatpush.bf16.msra.mxu0 %v1097
    %1728 = vmatpush.bf16.msra.mxu0 %v1095
    %1729 = vmatpush.bf16.msra.mxu0 %v1093
    %1730 = vmatpush.bf16.msra.mxu0 %v1091
    %1731 = vmatmul.bf16.gmra.mxu0 %v1721
    %v1732 = vpop.f32.mrf.mxu0
    %v1733 = vadd.f32 0.0, %v1732
    %v1734 = vpop.f32.mrf.mxu0
    %1735 = vdwg.mxu0
    %1736 = vmatpush.bf16.msra.mxu0 0
    %1737 = vmatpush.bf16.msra.mxu0 0
    %1738 = vmatpush.bf16.msra.mxu0 0
    %1739 = vmatpush.bf16.msra.mxu0 0
    %1740 = vmatpush.bf16.msra.mxu0 %v1098
    %1741 = vmatpush.bf16.msra.mxu0 %v1096
    %1742 = vmatpush.bf16.msra.mxu0 %v1094
    %1743 = vmatpush.bf16.msra.mxu0 %v1092
    %1744 = vmatmul.bf16.gmra.mxu0 %v1721
    %v1745 = vpop.f32.mrf.mxu0
    %v1746 = vadd.f32 0.0, %v1745
    %v1747 = vpop.f32.mrf.mxu0
    %1748 = vdwg.mxu0
    %v1751 = vrot.slane %v1733, 4
    %v1752 = vrot.slane %v1746, 4
    %v1755 = vadd.f32 %v1522, %v1751
    %v1756 = vadd.f32 %v1523, %v1752
    %v1757 = vxor.u32 %v1755, 2147483648
    %v1758 = vxor.u32 %v1756, 2147483648
    %v1759 = vmul.f32 %v1757, 1.442695
    %v1760 = vpow.pop %v1759
    %v1761 = vmul.f32 %v1758, 1.442695
    %v1762 = vpow.pop %v1761
    %v1763 = vadd.f32 %v1760, 1.0
    %v1764 = vadd.f32 %v1762, 1.0
    %v1765 = vrcp.pop %v1763
    %v1766 = vmul.f32 %v1763, %v1765
    %v1767 = vsub.f32 1.0, %v1766
    %v1768 = vmul.f32 %v1765, %v1767
    %v1769 = vadd.f32 %v1765, %v1768
    %vm1770 = vweird.f32 %v1763
    %vm1771 = vweird.f32 %v1765
    %vm1772 = vmor %vm1770, %vm1771
    %v1773 = vsel %vm1772, %v1765, %v1769
    %v1774 = vand.u32 2147483647, %v1763
    %vm1775 = vcmp.eq.f32.partialorder %v1774, 8.507059e+37
    %v1776 = vand.u32 %v1763, 2147483648
    %v1777 = vor.u32 1.1754944e-38, %v1776
    %v1778 = vsel %vm1775, %v1777, %v1773
    %v1779 = vmul.f32 1.0, %v1778
    %v1780 = vrcp.pop %v1764
    %v1781 = vmul.f32 %v1764, %v1780
    %v1782 = vsub.f32 1.0, %v1781
    %v1783 = vmul.f32 %v1780, %v1782
    %v1784 = vadd.f32 %v1780, %v1783
    %vm1785 = vweird.f32 %v1764
    %vm1786 = vweird.f32 %v1780
    %vm1787 = vmor %vm1785, %vm1786
    %v1788 = vsel %vm1787, %v1780, %v1784
    %v1789 = vand.u32 2147483647, %v1764
    %vm1790 = vcmp.eq.f32.partialorder %v1789, 8.507059e+37
    %v1791 = vand.u32 %v1764, 2147483648
    %v1792 = vor.u32 1.1754944e-38, %v1791
    %v1793 = vsel %vm1790, %v1792, %v1788
    %v1794 = vmul.f32 1.0, %v1793
    %v1795 = vtanh.pop %v1755
    %v1796 = vtanh.pop %v1756
    %v1797 = vsel %vm137, %v1795, %v1779
    %v1798 = vsel %vm138, %v1796, %v1794
    %v1800 = vrot.slane %v1712, 6
    %v1802 = vmul.f32 %v1797, %v1800
    %v1803 = vmul.f32 %v1797, %v1798
    %1805 = vrot.lane.b32.xlu0 %v1803, 64
    %v1806 = vpop.permute.xlu0 %1805
    %v1808 = vadd.f32 %v1802, %v1806
    %v1809 = vtanh.pop %v1808
    %v1810 = vmul.f32 %v1798, %v1809
    %v1811 = vpack.c.bf16 %v1810, %v1810
    %v1813 = vrot.slane %v1811, 2
    %1814 = vrot.lane.b32.xlu0 %v1813, 64
    %v1815 = vpop.permute.xlu0 %1814
    %v1817 = vsel %vm224, %v1815, 0
    %1819 = vmatpush.bf16.msra.mxu0 0
    %1820 = vmatpush.bf16.msra.mxu0 0
    %1821 = vmatpush.bf16.msra.mxu0 0
    %1822 = vmatpush.bf16.msra.mxu0 0
    %1823 = vmatpush.bf16.msra.mxu0 %v1097
    %1824 = vmatpush.bf16.msra.mxu0 %v1095
    %1825 = vmatpush.bf16.msra.mxu0 %v1093
    %1826 = vmatpush.bf16.msra.mxu0 %v1091
    %1827 = vmatmul.bf16.gmra.mxu0 %v1817
    %v1828 = vpop.f32.mrf.mxu0
    %v1829 = vadd.f32 0.0, %v1828
    %v1830 = vpop.f32.mrf.mxu0
    %1831 = vdwg.mxu0
    %1832 = vmatpush.bf16.msra.mxu0 0
    %1833 = vmatpush.bf16.msra.mxu0 0
    %1834 = vmatpush.bf16.msra.mxu0 0
    %1835 = vmatpush.bf16.msra.mxu0 0
    %1836 = vmatpush.bf16.msra.mxu0 %v1098
    %1837 = vmatpush.bf16.msra.mxu0 %v1096
    %1838 = vmatpush.bf16.msra.mxu0 %v1094
    %1839 = vmatpush.bf16.msra.mxu0 %v1092
    %1840 = vmatmul.bf16.gmra.mxu0 %v1817
    %v1841 = vpop.f32.mrf.mxu0
    %v1842 = vadd.f32 0.0, %v1841
    %v1843 = vpop.f32.mrf.mxu0
    %1844 = vdwg.mxu0
    %v1847 = vrot.slane %v1829, 2
    %v1848 = vrot.slane %v1842, 2
    %v1851 = vadd.f32 %v1618, %v1847
    %v1852 = vadd.f32 %v1619, %v1848
    %v1853 = vxor.u32 %v1851, 2147483648
    %v1854 = vxor.u32 %v1852, 2147483648
    %v1855 = vmul.f32 %v1853, 1.442695
    %v1856 = vpow.pop %v1855
    %v1857 = vmul.f32 %v1854, 1.442695
    %v1858 = vpow.pop %v1857
    %v1859 = vadd.f32 %v1856, 1.0
    %v1860 = vadd.f32 %v1858, 1.0
    %v1861 = vrcp.pop %v1859
    %v1862 = vmul.f32 %v1859, %v1861
    %v1863 = vsub.f32 1.0, %v1862
    %v1864 = vmul.f32 %v1861, %v1863
    %v1865 = vadd.f32 %v1861, %v1864
    %vm1866 = vweird.f32 %v1859
    %vm1867 = vweird.f32 %v1861
    %vm1868 = vmor %vm1866, %vm1867
    %v1869 = vsel %vm1868, %v1861, %v1865
    %v1870 = vand.u32 2147483647, %v1859
    %vm1871 = vcmp.eq.f32.partialorder %v1870, 8.507059e+37
    %v1872 = vand.u32 %v1859, 2147483648
    %v1873 = vor.u32 1.1754944e-38, %v1872
    %v1874 = vsel %vm1871, %v1873, %v1869
    %v1875 = vmul.f32 1.0, %v1874
    %v1876 = vrcp.pop %v1860
    %v1877 = vmul.f32 %v1860, %v1876
    %v1878 = vsub.f32 1.0, %v1877
    %v1879 = vmul.f32 %v1876, %v1878
    %v1880 = vadd.f32 %v1876, %v1879
    %vm1881 = vweird.f32 %v1860
    %vm1882 = vweird.f32 %v1876
    %vm1883 = vmor %vm1881, %vm1882
    %v1884 = vsel %vm1883, %v1876, %v1880
    %v1885 = vand.u32 2147483647, %v1860
    %vm1886 = vcmp.eq.f32.partialorder %v1885, 8.507059e+37
    %v1887 = vand.u32 %v1860, 2147483648
    %v1888 = vor.u32 1.1754944e-38, %v1887
    %v1889 = vsel %vm1886, %v1888, %v1884
    %v1890 = vmul.f32 1.0, %v1889
    %v1891 = vtanh.pop %v1851
    %v1892 = vtanh.pop %v1852
    %v1893 = vsel %vm137, %v1891, %v1875
    %v1894 = vsel %vm138, %v1892, %v1890
    %v1896 = vrot.slane %v1808, 6
    %v1898 = vmul.f32 %v1893, %v1896
    %v1899 = vmul.f32 %v1893, %v1894
    %1901 = vrot.lane.b32.xlu0 %v1899, 64
    %v1902 = vpop.permute.xlu0 %1901
    %v1904 = vadd.f32 %v1898, %v1902
    %v1905 = vtanh.pop %v1904
    %v1906 = vmul.f32 %v1894, %v1905
    %v1908 = vrot.slane %v1906, 6
    %1909 = vrot.lane.b32.xlu0 %v1908, 64
    %v1910 = vpop.permute.xlu0 %1909
    %1913 = vrot.lane.b32.xlu0 %v1222, 64
    %v1914 = vpop.permute.xlu0 %1913
    %v1916 = vsel %vm139, %v1910, %v1914
    %v1917 = vld [vmem:[#allocation6] sm:$0xff]
    %v1918 = vld [vmem:[#allocation6 + $0x8] sm:$0xff]
    %v1919 = vld [vmem:[#allocation6 + $0x10] sm:$0xff]
    %v1920 = vld [vmem:[#allocation6 + $0x18] sm:$0xff]
    %v1921 = vld [vmem:[#allocation6 + $0x20] sm:$0xff]
    %v1922 = vld [vmem:[#allocation6 + $0x28] sm:$0xff]
    %v1923 = vld [vmem:[#allocation6 + $0x30] sm:$0xff]
    %v1924 = vld [vmem:[#allocation6 + $0x38] sm:$0xff]
    %v1925 = vpack.c.bf16 %v1916, %v1916
    %v1926 = vpack.c.bf16 %v1918, %v1917
    %v1927 = vpack.c.bf16 %v1920, %v1919
    %v1928 = vpack.c.bf16 %v1922, %v1921
    %v1929 = vpack.c.bf16 %v1924, %v1923
    %v1930 = vld [vmem:[#allocation6 + $0x40] sm:$0x1]
    %v1931 = vperm.slane %v1930, 0
    %v1933 = vsel %vm224, %v1925, 0
    %1935 = vmatpush.bf16.msra.mxu0 0
    %1936 = vmatpush.bf16.msra.mxu0 0
    %1937 = vmatpush.bf16.msra.mxu0 0
    %1938 = vmatpush.bf16.msra.mxu0 0
    %1939 = vmatpush.bf16.msra.mxu0 %v1929
    %1940 = vmatpush.bf16.msra.mxu0 %v1928
    %1941 = vmatpush.bf16.msra.mxu0 %v1927
    %1942 = vmatpush.bf16.msra.mxu0 %v1926
    %1943 = vmatmul.bf16.gmra.mxu0 %v1933
    %v1944 = vpop.f32.mrf.mxu0
    %v1945 = vadd.f32 %v1931, %v1944
    %v1946 = vpop.f32.mrf.mxu0
    %1947 = vdwg.mxu0
    %v1948 = vld [vmem:[#allocation6 + $0x48] sm:$0xff]
    %v1949 = vld [vmem:[#allocation6 + $0x50] sm:$0xff]
    %v1950 = vld [vmem:[#allocation6 + $0x58] sm:$0xff]
    %v1951 = vld [vmem:[#allocation6 + $0x60] sm:$0xff]
    %v1952 = vld [vmem:[#allocation6 + $0x68] sm:$0xff]
    %v1953 = vld [vmem:[#allocation6 + $0x70] sm:$0xff]
    %v1954 = vld [vmem:[#allocation6 + $0x78] sm:$0xff]
    %v1955 = vld [vmem:[#allocation6 + $0x80] sm:$0xff]
    %v1956 = vld [vmem:[#allocation6 + $0x88] sm:$0xff]
    %v1957 = vld [vmem:[#allocation6 + $0x90] sm:$0xff]
    %v1958 = vld [vmem:[#allocation6 + $0x98] sm:$0xff]
    %v1959 = vld [vmem:[#allocation6 + $0xa0] sm:$0xff]
    %v1960 = vld [vmem:[#allocation6 + $0xa8] sm:$0xff]
    %v1961 = vld [vmem:[#allocation6 + $0xb0] sm:$0xff]
    %v1962 = vld [vmem:[#allocation6 + $0xb8] sm:$0xff]
    %v1963 = vld [vmem:[#allocation6 + $0xc0] sm:$0xff]
    %v1964 = vpack.c.bf16 %v1945, %v1945
    %v1965 = vpack.c.bf16 %v1949, %v1948
    %v1966 = vpack.c.bf16 %v1951, %v1950
    %v1967 = vpack.c.bf16 %v1953, %v1952
    %v1968 = vpack.c.bf16 %v1955, %v1954
    %v1969 = vpack.c.bf16 %v1957, %v1956
    %v1970 = vpack.c.bf16 %v1959, %v1958
    %v1971 = vpack.c.bf16 %v1961, %v1960
    %v1972 = vpack.c.bf16 %v1963, %v1962
    %v1973 = vld [vmem:[#allocation6 + $0xc8] sm:$0x1]
    %v1974 = vperm.slane %v1973, 0
    %1975 = vmatpush.bf16.msra.mxu0 %v1972
    %1976 = vmatpush.bf16.msra.mxu0 %v1971
    %1977 = vmatpush.bf16.msra.mxu0 %v1970
    %1978 = vmatpush.bf16.msra.mxu0 %v1969
    %1979 = vmatpush.bf16.msra.mxu0 %v1968
    %1980 = vmatpush.bf16.msra.mxu0 %v1967
    %1981 = vmatpush.bf16.msra.mxu0 %v1966
    %1982 = vmatpush.bf16.msra.mxu0 %v1965
    %1983 = vmatmul.bf16.gmra.mxu0 %v1964
    %v1984 = vpop.f32.mrf.mxu0
    %v1985 = vadd.f32 %v1974, %v1984
    %v1986 = vpop.f32.mrf.mxu0
    %1987 = vdwg.mxu0
    %1988 = vst [vmem:[#allocation8] sm:$0x3] %v1985
    // Predicated region
    $region26: #{lstm_forward.1} parent=1 // pred_check
      _
    $region27: #{lstm_forward.1} parent=1 // pred_check_branch
      %1990 = sbr.rel (0) target = $region29
    $region28: #{lstm_forward.1} parent=1 // pred_region
      %1992 = vsyncadd [#allocation5], 0
      %s1994 = sshll.u32 [#allocation8], 4
      %s1995 = int_to_ptr.vmem [resolvable:$true] %s1994
      %s1996 = sshll.u32 %s4, 4
      %s1997 = int_to_ptr.hbm [resolvable:$true] %s1996
      %1999 = dma.vmem_to_hbm [thread:$0]  %s1995, 32, %s1997, [#allocation5]
    $region29: #{lstm_forward.1} parent=1 // pred_fallthru
      _
    // Predicated region
    $region30: #{lstm_forward.1} parent=1 // pred_check
      _
    $region31: #{lstm_forward.1} parent=1 // pred_check_branch
      %2001 = sbr.rel (0) target = $region33
    $region32: #{lstm_forward.1} parent=1 // pred_region
      %2003 = dma.done [#allocation5], 32
    $region33: #{lstm_forward.1} parent=1 // pred_fallthru
      _
    %2004 = vsyncpa [#allocation4], 1
    %2005 = vsyncpa [#allocation7], 1
    %2006 = vsyncpa [#allocation5], 1

</llo_original>
